<compile_context>
chip_gen: v7x
topology: tpu7x:2x2x1
jax: 0.10.0
libtpu: 0.0.40
codegen_flags: <defaults>
</compile_context>

<pallas_src>
import functools
import numpy as np
import jax
import jax.numpy as jnp
from jax.experimental import pallas as pl
from jax.experimental.pallas import tpu as pltpu

SCALES = (1, 2, 3, 6)
SS_TOTAL = sum(s * s for s in SCALES)          # 1 + 4 + 9 + 36 = 50
BN_EPS = 1e-5

# (branch_size, branch_column_offset) into the 50-wide pooled block
_BRANCH_LAYOUT = []
_off = 0
for _s in SCALES:
    _BRANCH_LAYOUT.append((_s * _s, _off))
    _off += _s * _s
_BRANCH_LAYOUT = tuple(_BRANCH_LAYOUT)


# ----------------------------------------------------------------------------
# Static (weight-like) matrices for adaptive avg-pool and bilinear upsample.
# ----------------------------------------------------------------------------
def _adaptive_avg_pool_matrix(in_size: int, out_size: int) -> np.ndarray:
    """Row-stochastic P (out, in): pooled = P @ x, matching AdaptiveAvgPool."""
    P = np.zeros((out_size, in_size), dtype=np.float32)
    for i in range(out_size):
        start = (i * in_size) // out_size
        end = -(-((i + 1) * in_size) // out_size)  # ceil div
        P[i, start:end] = 1.0 / float(end - start)
    return P


def _bilinear_upsample_matrix(in_size: int, out_size: int) -> np.ndarray:
    """U (out, in): up = U @ x, matching F.interpolate(bilinear, align_corners=False)."""
    U = np.zeros((out_size, in_size), dtype=np.float32)
    scale = in_size / out_size
    for o in range(out_size):
        src = scale * (o + 0.5) - 0.5
        src = max(src, 0.0)                       # PyTorch clamps negative src
        i0 = min(int(np.floor(src)), in_size - 1)
        i1 = min(i0 + 1, in_size - 1)
        lam = src - i0
        U[o, i0] += 1.0 - lam
        U[o, i1] += lam
    return U


@functools.lru_cache(maxsize=None)
def _ppm_geometry(h: int, w: int):
    """Precompute fused pool / upsample matrices for all scales (cached)."""
    p_rows, u_cols = [], []
    for s in SCALES:
        ph = _adaptive_avg_pool_matrix(h, s)        # (s, H)
        pw = _adaptive_avg_pool_matrix(w, s)        # (s, W)
        p_rows.append(np.kron(ph, pw))              # (s*s, H*W)
        uh = _bilinear_upsample_matrix(s, h)        # (H, s)
        uw = _bilinear_upsample_matrix(s, w)        # (W, s)
        u_cols.append(np.kron(uh, uw))              # (H*W, s*s)
    p_allT = np.concatenate(p_rows, axis=0).T       # (H*W, 50)
    u_allT = np.concatenate(u_cols, axis=1).T       # (50, H*W)
    return (jnp.asarray(p_allT, jnp.float32), jnp.asarray(u_allT, jnp.float32))


def _pick_hw_tile(hw: int, target: int = 512) -> int:
    """Largest HW tile <= target that divides HW and keeps lane alignment."""
    if hw <= target or hw % 128 != 0:
        return hw
    best = 128
    t = 256
    while t <= target:
        if hw % t == 0:
            best = t
        t += 128
    return best


# ----------------------------------------------------------------------------
# Pallas kernels
# ----------------------------------------------------------------------------
def _pool_kernel(x_ref, pt_ref, pooled_ref):
    """Adaptive avg-pool (all 4 scales fused): accumulate over HW tiles."""
    @pl.when(pl.program_id(1) == 0)
    def _():
        pooled_ref[...] = jnp.zeros_like(pooled_ref)
    acc = jnp.dot(x_ref[0], pt_ref[...], preferred_element_type=jnp.float32)
    pooled_ref[...] += acc[None]                    # (1, C, 50) accumulator


def _fuse_kernel(x_ref, pooled_ref, w_ref, b_ref, ut_ref, o_ref, *, cq):
    """Identity copy + per-branch (1x1 conv + BN bias + ReLU + bilinear up),
    writing one (C + 4*Cq, tHW) output tile with a single full-block store."""
    pooled = pooled_ref[0]                          # (C, 50) f32
    w_all = w_ref[...]                              # (4*Cq, C) BN-scale folded
    b_all = b_ref[...]                              # (4*Cq, 1)
    ut_all = ut_ref[...]                            # (50, tHW)

    parts = [x_ref[0].astype(o_ref.dtype)]          # identity branch (C, tHW)
    for bi, (ss, off) in enumerate(_BRANCH_LAYOUT):
        w_s = w_all[bi * cq:(bi + 1) * cq, :]       # (Cq, C)
        b_s = b_all[bi * cq:(bi + 1) * cq, :]       # (Cq, 1)
        y = jnp.dot(w_s, pooled[:, off:off + ss],
                    preferred_element_type=jnp.float32)          # 1x1 conv
        y = jnp.maximum(y + b_s, 0.0)                             # BN bias + ReLU
        up = jnp.dot(y, ut_all[off:off + ss, :],
                     preferred_element_type=jnp.float32)          # bilinear up
        parts.append(up.astype(o_ref.dtype))
    o_ref[0] = jnp.concatenate(parts, axis=0)       # (C + 4*Cq, tHW)


@functools.partial(jax.jit, static_argnames=("cq",))
def _ppm_impl(x_flat, w_cat, bias, p_allT, u_allT, *, cq):
    n, c, hw = x_flat.shape
    n_branch = len(SCALES)
    c_out = c + n_branch * cq
    thw = _pick_hw_tile(hw)
    n_t = hw // thw

    # Pass 1: fused adaptive avg pool (reduction over HW tiles).
    pooled = pl.pallas_call(
        _pool_kernel,
        out_shape=jax.ShapeDtypeStruct((n, c, SS_TOTAL), jnp.float32),
        grid_spec=pltpu.PrefetchScalarGridSpec(
            num_scalar_prefetch=0,
            grid=(n, n_t),
            in_specs=[
                pl.BlockSpec((1, c, thw), lambda i, t: (i, 0, t)),       # x tile
                pl.BlockSpec((thw, SS_TOTAL), lambda i, t: (t, 0)),      # P_all^T tile
            ],
            out_specs=pl.BlockSpec((1, c, SS_TOTAL), lambda i, t: (i, 0, 0)),
        ),
        compiler_params=pltpu.CompilerParams(
            dimension_semantics=("parallel", "arbitrary")),
    )(x_flat, p_allT)

    # Pass 2: conv1x1 + BN + ReLU + upsample for all branches, plus identity
    # copy, written directly into the channel-concatenated output.
    out = pl.pallas_call(
        functools.partial(_fuse_kernel, cq=cq),
        out_shape=jax.ShapeDtypeStruct((n, c_out, hw), x_flat.dtype),
        grid_spec=pltpu.PrefetchScalarGridSpec(
            num_scalar_prefetch=0,
            grid=(n, n_t),
            in_specs=[
                pl.BlockSpec((1, c, thw), lambda i, t: (i, 0, t)),         # x tile
                pl.BlockSpec((1, c, SS_TOTAL), lambda i, t: (i, 0, 0)),    # pooled
                pl.BlockSpec((n_branch * cq, c), lambda i, t: (0, 0)),     # W (BN folded)
                pl.BlockSpec((n_branch * cq, 1), lambda i, t: (0, 0)),     # bias
                pl.BlockSpec((SS_TOTAL, thw), lambda i, t: (0, t)),        # U_all^T tile
            ],
            out_specs=pl.BlockSpec((1, c_out, thw), lambda i, t: (i, 0, t)),
        ),
        compiler_params=pltpu.CompilerParams(
            dimension_semantics=("parallel", "parallel")),
    )(x_flat, pooled, w_cat, bias, u_allT)
    return out


# ----------------------------------------------------------------------------
# Parameter init (deterministic, synthetic) and full forward.
# ----------------------------------------------------------------------------
def init_ppm_params(key, in_dim):
    cq = in_dim // 4
    ws, bs = [], []
    for _scale in SCALES:
        key, k1, k2, k3, k4, k5 = jax.random.split(key, 6)
        # Conv2d(in_dim, cq, kernel_size=1, bias=False)
        w = jax.random.normal(k1, (cq, in_dim), jnp.float32) / np.sqrt(in_dim)
        # BatchNorm2d(cq) -- eval mode, deterministic affine + running stats.
        gamma = 1.0 + 0.1 * jax.random.normal(k2, (cq,), jnp.float32)
        beta = 0.1 * jax.random.normal(k3, (cq,), jnp.float32)
        running_mean = 0.1 * jax.random.normal(k4, (cq,), jnp.float32)
        running_var = jnp.abs(1.0 + 0.1 * jax.random.normal(k5, (cq,), jnp.float32))
        inv = gamma / jnp.sqrt(running_var + BN_EPS)
        ws.append(w * inv[:, None])                 # fold BN scale into conv weight
        bs.append(beta - running_mean * inv)        # folded BN bias
        # TODO(synk): training-mode BatchNorm (batch statistics) not implemented;
        # eval-mode running-stat normalization is folded into the conv weight/bias.
    return dict(
        cq=cq,
        w_cat=jnp.concatenate(ws, axis=0),                  # (4*Cq, C)
        bias=jnp.concatenate(bs, axis=0)[:, None],          # (4*Cq, 1)
    )


def ppm_forward(x_nchw, params):
    n, c, h, w = x_nchw.shape
    cq = params["cq"]
    p_allT, u_allT = _ppm_geometry(h, w)
    x_flat = x_nchw.reshape(n, c, h * w)            # free (no data movement)
    out = _ppm_impl(x_flat, params["w_cat"], params["bias"], p_allT, u_allT, cq=cq)
    return out.reshape(n, c + len(SCALES) * cq, h, w)


# ----------------------------------------------------------------------------
# Pure-JAX reference (same math, no Pallas) for a correctness check.
# ----------------------------------------------------------------------------
def _ppm_reference(x_nchw, params):
    n, c, h, w = x_nchw.shape
    cq = params["cq"]
    p_allT, u_allT = _ppm_geometry(h, w)
    xf = x_nchw.reshape(n, c, h * w).astype(jnp.float32)
    pooled = jnp.einsum("ncp,ps->ncs", xf, p_allT)
    outs = [xf]
    for bi, (ss, off) in enumerate(_BRANCH_LAYOUT):
        w_s = params["w_cat"][bi * cq:(bi + 1) * cq]
        b_s = params["bias"][bi * cq:(bi + 1) * cq]
        y = jnp.maximum(
            jnp.einsum("qc,ncs->nqs", w_s, pooled[..., off:off + ss]) + b_s[None],
            0.0)
        outs.append(jnp.einsum("nqs,sp->nqp", y, u_allT[off:off + ss]))
    return jnp.concatenate(outs, axis=1).reshape(n, -1, h, w).astype(x_nchw.dtype)


if __name__ == "__main__":
    key = jax.random.PRNGKey(0)
    k_x, k_p = jax.random.split(key)
    in_dim, H, W, N = 8, 16, 16, 2
    x = jax.random.normal(k_x, (N, in_dim, H, W), jnp.float32)   # NCHW, like PyTorch
    params = init_ppm_params(k_p, in_dim)

    out = jax.block_until_ready(ppm_forward(x, params))

    expected_channels = in_dim + 4 * (in_dim // 4)
    assert out.shape == (N, expected_channels, H, W), out.shape
    assert bool(jnp.all(jnp.isfinite(out)))

    ref = jax.block_until_ready(_ppm_reference(x, params))
    assert bool(jnp.allclose(out, ref, atol=1e-4, rtol=1e-4)), \
        float(jnp.max(jnp.abs(out - ref)))
    print("KERNEL_OK")
</pallas_src>

<mosaic_0001>
module attributes {stable_mosaic.version = 11 : i64} {
  func.func @_pool_kernel(%arg0: i32, %arg1: i32, %arg2: memref<1x8x256xf32, #tpu.memory_space<vmem>>, %arg3: memref<256x50xf32, #tpu.memory_space<vmem>>, %arg4: memref<1x8x50xf32, #tpu.memory_space<vmem>>) attributes {dimension_semantics = [#tpu.dimension_semantics<parallel>, #tpu.dimension_semantics<arbitrary>], iteration_bounds = array<i64: 2, 1>, scalar_prefetch = 0 : i64, scratch_operands = 0 : i64, tpu.core_type = #tpu.core_type<tc>, window_params = [{transform_indices = @transform_0, window_bounds = array<i64: 1, 8, 256>}, {transform_indices = @transform_1, window_bounds = array<i64: 256, 50>}, {transform_indices = @transform_2, window_bounds = array<i64: 1, 8, 50>}]} {
    %c0_i32 = arith.constant 0 : i32
    %0 = arith.cmpi eq, %arg1, %c0_i32 : i32
    %1 = arith.extui %0 : i1 to i32
    %c0_i32_0 = arith.constant 0 : i32
    %2 = arith.cmpi ne, %1, %c0_i32_0 : i32
    scf.if %2 {
      %cst_11 = arith.constant 0.000000e+00 : f32
      %11 = vector.broadcast %cst_11 : f32 to vector<1x8x50xf32>
      %c0_12 = arith.constant 0 : index
      %c0_13 = arith.constant 0 : index
      %c0_14 = arith.constant 0 : index
      %12 = vector.load %arg4[%c0_12, %c0_13, %c0_14] : memref<1x8x50xf32, #tpu.memory_space<vmem>>, vector<1x8x50xf32>
      tpu.vector_store %arg4[%c0_12, %c0_13, %c0_14], %11 {strides = array<i32>} : memref<1x8x50xf32, #tpu.memory_space<vmem>>, vector<1x8x50xf32>,
    } else {
    }
    %c0 = arith.constant 0 : index
    %c0_1 = arith.constant 0 : index
    %c0_2 = arith.constant 0 : index
    %3 = vector.load %arg2[%c0, %c0_1, %c0_2] : memref<1x8x256xf32, #tpu.memory_space<vmem>>, vector<1x8x256xf32>
    %4 = vector.shape_cast %3 : vector<1x8x256xf32> to vector<8x256xf32>
    %c0_3 = arith.constant 0 : index
    %c0_4 = arith.constant 0 : index
    %5 = vector.load %arg3[%c0_3, %c0_4] : memref<256x50xf32, #tpu.memory_space<vmem>>, vector<256x50xf32>
    %cst = arith.constant dense<0.000000e+00> : vector<8x50xf32>
    %6 = tpu.matmul %4, %5, %cst {dimension_numbers = #tpu.dot_dimension_numbers<[1], [0], [0], [1], [0, 0, 1, 1], [], []>} : vector<8x256xf32>, vector<256x50xf32>, vector<8x50xf32> -> vector<8x50xf32>
    %c0_5 = arith.constant 0 : index
    %c0_6 = arith.constant 0 : index
    %c0_7 = arith.constant 0 : index
    %7 = vector.load %arg4[%c0_5, %c0_6, %c0_7] : memref<1x8x50xf32, #tpu.memory_space<vmem>>, vector<1x8x50xf32>
    %8 = vector.shape_cast %6 : vector<8x50xf32> to vector<1x8x50xf32>
    %9 = arith.addf %7, %8 : vector<1x8x50xf32>
    %c0_8 = arith.constant 0 : index
    %c0_9 = arith.constant 0 : index
    %c0_10 = arith.constant 0 : index
    %10 = vector.load %arg4[%c0_8, %c0_9, %c0_10] : memref<1x8x50xf32, #tpu.memory_space<vmem>>, vector<1x8x50xf32>
    tpu.vector_store %arg4[%c0_8, %c0_9, %c0_10], %9 {strides = array<i32>} : memref<1x8x50xf32, #tpu.memory_space<vmem>>, vector<1x8x50xf32>,
    return
  }
  func.func @transform_0(%arg0: i32, %arg1: i32) -> (i32, i32, i32) {
    %c0_i32 = arith.constant 0 : i32
    %c0_i32_0 = arith.constant 0 : i32
    return %arg0, %c0_i32, %arg1 : i32, i32, i32
  }
  func.func @transform_1(%arg0: i32, %arg1: i32) -> (i32, i32) {
    %c0_i32 = arith.constant 0 : i32
    %c0_i32_0 = arith.constant 0 : i32
    return %arg1, %c0_i32 : i32, i32
  }
  func.func @transform_2(%arg0: i32, %arg1: i32) -> (i32, i32, i32) {
    %c0_i32 = arith.constant 0 : i32
    %c0_i32_0 = arith.constant 0 : i32
    %c0_i32_1 = arith.constant 0 : i32
    return %arg0, %c0_i32, %c0_i32_0 : i32, i32, i32
  }
}

module attributes {stable_mosaic.version = 11 : i64} {
  func.func @_fuse_kernel(%arg0: i32, %arg1: i32, %arg2: memref<1x8x256xf32, #tpu.memory_space<vmem>>, %arg3: memref<1x8x50xf32, #tpu.memory_space<vmem>>, %arg4: memref<8x8xf32, #tpu.memory_space<vmem>>, %arg5: memref<8x1xf32, #tpu.memory_space<vmem>>, %arg6: memref<50x256xf32, #tpu.memory_space<vmem>>, %arg7: memref<1x16x256xf32, #tpu.memory_space<vmem>>) attributes {dimension_semantics = [#tpu.dimension_semantics<parallel>, #tpu.dimension_semantics<parallel>], iteration_bounds = array<i64: 2, 1>, scalar_prefetch = 0 : i64, scratch_operands = 0 : i64, tpu.core_type = #tpu.core_type<tc>, window_params = [{transform_indices = @transform_0, window_bounds = array<i64: 1, 8, 256>}, {transform_indices = @transform_1, window_bounds = array<i64: 1, 8, 50>}, {pipeline_mode = #tpu.pipeline_mode<synchronous>, transform_indices = @transform_2, window_bounds = array<i64: 8, 8>}, {pipeline_mode = #tpu.pipeline_mode<synchronous>, transform_indices = @transform_3, window_bounds = array<i64: 8, 1>}, {transform_indices = @transform_4, window_bounds = array<i64: 50, 256>}, {transform_indices = @transform_5, window_bounds = array<i64: 1, 16, 256>}]} {
    %c0 = arith.constant 0 : index
    %c0_0 = arith.constant 0 : index
    %c0_1 = arith.constant 0 : index
    %0 = vector.load %arg3[%c0, %c0_0, %c0_1] : memref<1x8x50xf32, #tpu.memory_space<vmem>>, vector<1x8x50xf32>
    %1 = vector.shape_cast %0 : vector<1x8x50xf32> to vector<8x50xf32>
    %c0_2 = arith.constant 0 : index
    %c0_3 = arith.constant 0 : index
    %2 = vector.load %arg4[%c0_2, %c0_3] : memref<8x8xf32, #tpu.memory_space<vmem>>, vector<8x8xf32>
    %c0_4 = arith.constant 0 : index
    %c0_5 = arith.constant 0 : index
    %3 = vector.load %arg5[%c0_4, %c0_5] : memref<8x1xf32, #tpu.memory_space<vmem>>, vector<8x1xf32>
    %c0_6 = arith.constant 0 : index
    %c0_7 = arith.constant 0 : index
    %4 = vector.load %arg6[%c0_6, %c0_7] : memref<50x256xf32, #tpu.memory_space<vmem>>, vector<50x256xf32>
    %c0_8 = arith.constant 0 : index
    %c0_9 = arith.constant 0 : index
    %c0_10 = arith.constant 0 : index
    %5 = vector.load %arg2[%c0_8, %c0_9, %c0_10] : memref<1x8x256xf32, #tpu.memory_space<vmem>>, vector<1x8x256xf32>
    %6 = vector.shape_cast %5 : vector<1x8x256xf32> to vector<8x256xf32>
    %7 = vector.extract_strided_slice %2 {offsets = [0, 0], sizes = [2, 8], strides = [1, 1]} : vector<8x8xf32> to vector<2x8xf32>
    %8 = vector.extract_strided_slice %3 {offsets = [0, 0], sizes = [2, 1], strides = [1, 1]} : vector<8x1xf32> to vector<2x1xf32>
    %9 = vector.extract_strided_slice %1 {offsets = [0, 0], sizes = [8, 1], strides = [1, 1]} : vector<8x50xf32> to vector<8x1xf32>
    %cst = arith.constant dense<0.000000e+00> : vector<2x1xf32>
    %10 = tpu.matmul %7, %9, %cst {dimension_numbers = #tpu.dot_dimension_numbers<[1], [0], [0], [1], [0, 0, 1, 1], [], []>} : vector<2x8xf32>, vector<8x1xf32>, vector<2x1xf32> -> vector<2x1xf32>
    %11 = arith.addf %10, %8 : vector<2x1xf32>
    %cst_11 = arith.constant 0.000000e+00 : f32
    %12 = vector.broadcast %cst_11 : f32 to vector<2x1xf32>
    %13 = arith.maximumf %11, %12 : vector<2x1xf32>
    %14 = vector.extract_strided_slice %4 {offsets = [0, 0], sizes = [1, 256], strides = [1, 1]} : vector<50x256xf32> to vector<1x256xf32>
    %cst_12 = arith.constant dense<0.000000e+00> : vector<2x256xf32>
    %15 = tpu.matmul %13, %14, %cst_12 {dimension_numbers = #tpu.dot_dimension_numbers<[1], [0], [0], [1], [0, 0, 1, 1], [], []>} : vector<2x1xf32>, vector<1x256xf32>, vector<2x256xf32> -> vector<2x256xf32>
    %16 = vector.extract_strided_slice %2 {offsets = [2, 0], sizes = [2, 8], strides = [1, 1]} : vector<8x8xf32> to vector<2x8xf32>
    %17 = vector.extract_strided_slice %3 {offsets = [2, 0], sizes = [2, 1], strides = [1, 1]} : vector<8x1xf32> to vector<2x1xf32>
    %18 = vector.extract_strided_slice %1 {offsets = [0, 1], sizes = [8, 4], strides = [1, 1]} : vector<8x50xf32> to vector<8x4xf32>
    %cst_13 = arith.constant dense<0.000000e+00> : vector<2x4xf32>
    %19 = tpu.matmul %16, %18, %cst_13 {dimension_numbers = #tpu.dot_dimension_numbers<[1], [0], [0], [1], [0, 0, 1, 1], [], []>} : vector<2x8xf32>, vector<8x4xf32>, vector<2x4xf32> -> vector<2x4xf32>
    %20 = vector.broadcast %17 : vector<2x1xf32> to vector<2x4xf32>
    %21 = arith.addf %19, %20 : vector<2x4xf32>
    %cst_14 = arith.constant 0.000000e+00 : f32
    %22 = vector.broadcast %cst_14 : f32 to vector<2x4xf32>
    %23 = arith.maximumf %21, %22 : vector<2x4xf32>
    %24 = vector.extract_strided_slice %4 {offsets = [1, 0], sizes = [4, 256], strides = [1, 1]} : vector<50x256xf32> to vector<4x256xf32>
    %cst_15 = arith.constant dense<0.000000e+00> : vector<2x256xf32>
    %25 = tpu.matmul %23, %24, %cst_15 {dimension_numbers = #tpu.dot_dimension_numbers<[1], [0], [0], [1], [0, 0, 1, 1], [], []>} : vector<2x4xf32>, vector<4x256xf32>, vector<2x256xf32> -> vector<2x256xf32>
    %26 = vector.extract_strided_slice %2 {offsets = [4, 0], sizes = [2, 8], strides = [1, 1]} : vector<8x8xf32> to vector<2x8xf32>
    %27 = vector.extract_strided_slice %3 {offsets = [4, 0], sizes = [2, 1], strides = [1, 1]} : vector<8x1xf32> to vector<2x1xf32>
    %28 = vector.extract_strided_slice %1 {offsets = [0, 5], sizes = [8, 9], strides = [1, 1]} : vector<8x50xf32> to vector<8x9xf32>
    %cst_16 = arith.constant dense<0.000000e+00> : vector<2x9xf32>
    %29 = tpu.matmul %26, %28, %cst_16 {dimension_numbers = #tpu.dot_dimension_numbers<[1], [0], [0], [1], [0, 0, 1, 1], [], []>} : vector<2x8xf32>, vector<8x9xf32>, vector<2x9xf32> -> vector<2x9xf32>
    %30 = vector.broadcast %27 : vector<2x1xf32> to vector<2x9xf32>
    %31 = arith.addf %29, %30 : vector<2x9xf32>
    %cst_17 = arith.constant 0.000000e+00 : f32
    %32 = vector.broadcast %cst_17 : f32 to vector<2x9xf32>
    %33 = arith.maximumf %31, %32 : vector<2x9xf32>
    %34 = vector.extract_strided_slice %4 {offsets = [5, 0], sizes = [9, 256], strides = [1, 1]} : vector<50x256xf32> to vector<9x256xf32>
    %cst_18 = arith.constant dense<0.000000e+00> : vector<2x256xf32>
    %35 = tpu.matmul %33, %34, %cst_18 {dimension_numbers = #tpu.dot_dimension_numbers<[1], [0], [0], [1], [0, 0, 1, 1], [], []>} : vector<2x9xf32>, vector<9x256xf32>, vector<2x256xf32> -> vector<2x256xf32>
    %36 = vector.extract_strided_slice %2 {offsets = [6, 0], sizes = [2, 8], strides = [1, 1]} : vector<8x8xf32> to vector<2x8xf32>
    %37 = vector.extract_strided_slice %3 {offsets = [6, 0], sizes = [2, 1], strides = [1, 1]} : vector<8x1xf32> to vector<2x1xf32>
    %38 = vector.extract_strided_slice %1 {offsets = [0, 14], sizes = [8, 36], strides = [1, 1]} : vector<8x50xf32> to vector<8x36xf32>
    %cst_19 = arith.constant dense<0.000000e+00> : vector<2x36xf32>
    %39 = tpu.matmul %36, %38, %cst_19 {dimension_numbers = #tpu.dot_dimension_numbers<[1], [0], [0], [1], [0, 0, 1, 1], [], []>} : vector<2x8xf32>, vector<8x36xf32>, vector<2x36xf32> -> vector<2x36xf32>
    %40 = vector.broadcast %37 : vector<2x1xf32> to vector<2x36xf32>
    %41 = arith.addf %39, %40 : vector<2x36xf32>
    %cst_20 = arith.constant 0.000000e+00 : f32
    %42 = vector.broadcast %cst_20 : f32 to vector<2x36xf32>
    %43 = arith.maximumf %41, %42 : vector<2x36xf32>
    %44 = vector.extract_strided_slice %4 {offsets = [14, 0], sizes = [36, 256], strides = [1, 1]} : vector<50x256xf32> to vector<36x256xf32>
    %cst_21 = arith.constant dense<0.000000e+00> : vector<2x256xf32>
    %45 = tpu.matmul %43, %44, %cst_21 {dimension_numbers = #tpu.dot_dimension_numbers<[1], [0], [0], [1], [0, 0, 1, 1], [], []>} : vector<2x36xf32>, vector<36x256xf32>, vector<2x256xf32> -> vector<2x256xf32>
    %46 = tpu.concatenate %6, %15, %25, %35, %45 in 0 : vector<8x256xf32>, vector<2x256xf32>, vector<2x256xf32>, vector<2x256xf32>, vector<2x256xf32> -> vector<16x256xf32>
    %c0_22 = arith.constant 0 : index
    %c0_23 = arith.constant 0 : index
    %c0_24 = arith.constant 0 : index
    %47 = vector.load %arg7[%c0_22, %c0_23, %c0_24] : memref<1x16x256xf32, #tpu.memory_space<vmem>>, vector<1x16x256xf32>
    %48 = vector.shape_cast %47 : vector<1x16x256xf32> to vector<16x256xf32>
    %49 = vector.shape_cast %46 : vector<16x256xf32> to vector<1x16x256xf32>
    tpu.vector_store %arg7[%c0_22, %c0_23, %c0_24], %49 {strides = array<i32>} : memref<1x16x256xf32, #tpu.memory_space<vmem>>, vector<1x16x256xf32>,
    return
  }
  func.func @transform_0(%arg0: i32, %arg1: i32) -> (i32, i32, i32) {
    %c0_i32 = arith.constant 0 : i32
    %c0_i32_0 = arith.constant 0 : i32
    return %arg0, %c0_i32, %arg1 : i32, i32, i32
  }
  func.func @transform_1(%arg0: i32, %arg1: i32) -> (i32, i32, i32) {
    %c0_i32 = arith.constant 0 : i32
    %c0_i32_0 = arith.constant 0 : i32
    %c0_i32_1 = arith.constant 0 : i32
    return %arg0, %c0_i32, %c0_i32_0 : i32, i32, i32
  }
  func.func @transform_2(%arg0: i32, %arg1: i32) -> (i32, i32) {
    %c0_i32 = arith.constant 0 : i32
    %c0_i32_0 = arith.constant 0 : i32
    %c0_i32_1 = arith.constant 0 : i32
    return %c0_i32, %c0_i32_0 : i32, i32
  }
  func.func @transform_3(%arg0: i32, %arg1: i32) -> (i32, i32) {
    %c0_i32 = arith.constant 0 : i32
    %c0_i32_0 = arith.constant 0 : i32
    %c0_i32_1 = arith.constant 0 : i32
    return %c0_i32, %c0_i32_0 : i32, i32
  }
  func.func @transform_4(%arg0: i32, %arg1: i32) -> (i32, i32) {
    %c0_i32 = arith.constant 0 : i32
    %c0_i32_0 = arith.constant 0 : i32
    return %c0_i32, %arg1 : i32, i32
  }
  func.func @transform_5(%arg0: i32, %arg1: i32) -> (i32, i32, i32) {
    %c0_i32 = arith.constant 0 : i32
    %c0_i32_0 = arith.constant 0 : i32
    return %arg0, %c0_i32, %arg1 : i32, i32, i32
  }
}

</mosaic_0001>

<llo_original>
// kernel: _ppm_impl.2
$region0: #{_ppm_impl.2}
  #allocation0 [shape = 'u32[]', space=smem, size = 0x4, offset = 0x4, fixed_abs, tag = 'smem constant byte address 0x4 - core index']
  #allocation1 [shape = 'u32[144,128]{1,0:T(1,128)}', space=vmem, size = 0x12000, scoped, tag = 'internal scratch']
  %s0 = inlined_call_operand.vmem [shape: f32[2,8,256], index: 0, kind: input, shape index: {}]
  %s1 = inlined_call_operand.vmem [shape: f32[256,50], index: 1, kind: input, shape index: {}]
  %s2 = inlined_call_operand.vmem [shape: f32[2,8,50], index: 2, kind: output, shape index: {}]
  %s3 = sld [smem:[#allocation0]]
  $region45: #{_ppm_impl.2} parent=0
    _
  %s5 = ssub.s32 1, %s3
  %s6 = scalar_select 0, %s5, %s3
  loop: start=0, step=1, limit=4
  $region2: #{_ppm_impl.2} parent=0 // loop_pre_header
    _
  $region3: #{_ppm_impl.2} parent=0 // loop_header
    %s8 = sphi 0, %s12
    %p9 = scmp.ge.s32.totalorder %s8, 4
    %s15 = sphi 0, %s27
    %s16 = sphi 0, %s23
    %s17 = sphi 0, %s15
    %s18 = sphi 0, %s16
    %s19 = sphi 0, %s17
    %s20 = sphi 0, %s18
    %s32 = sphi 0, %s34
    %s35 = sphi 0, %s32
    %s36 = sphi 0, %s35
    %s52 = sphi 0, %s36
    %s58 = sphi 0, %s60
    %s61 = sphi 0, %s58
    %s62 = sphi 0, %s61
    %s78 = sphi 0, %s62
    %s84 = sphi 0, %s86
    %s87 = sphi 0, %s84
    %s88 = sphi 0, %s87
    %s104 = sphi 0, %s88
  $region4: #{_ppm_impl.2} parent=0 // loop_header_branch
    %11 = sbr.rel (%p9) target = $region8
  $region5: #{_ppm_impl.2} parent=0 // loop_body
    %s13 = ssub.s32 %s8, 1
    %s14 = ssub.s32 %s8, 2
    %s21 = sadd.s32 1, %s16
    %p22 = scmp.ge.s32.totalorder %s21, 1
    %s23 = scalar_select %p22, 0, %s21
    %s24 = sadd.s32 1, %s15
    %s25 = scalar_select %p22, %s24, %s15
    %p26 = scmp.ge.s32.totalorder %s25, 2
    %s27 = scalar_select %p26, 0, %s25
    %s28 = ssub.s32 %s15, %s27
    %s29 = ssub.s32 %s16, %s23
    %s30 = sor.u32 %s28, %s29
    %p31 = scmp.eq.s32.totalorder %s30, 0
    %s33 = sadd.s32 %s32, 1
    %s34 = scalar_select %p31, %s32, %s33
    %p37 = pneg %p31
    %p38 = scmp.eq.s32.totalorder %s8, 1
    %p39 = por %p37, %p38
    %p40 = scmp.ne.s32.totalorder %s32, %s35
    %p41 = scmp.eq.s32.totalorder %s8, 0
    %p42 = por %p40, %p41
    %p43 = scmp.ne.s32.totalorder %s32, %s35
    %p44 = scmp.eq.s32.totalorder %s13, 1
    %p45 = por %p43, %p44
    %p46 = scmp.ne.s32.totalorder %s35, %s36
    %p47 = scmp.eq.s32.totalorder %s13, 0
    %p48 = por %p46, %p47
    %p49 = scmp.ne.s32.totalorder %s35, %s36
    %p50 = scmp.eq.s32.totalorder %s14, 1
    %p51 = por %p49, %p50
    %p53 = scmp.ne.s32.totalorder %s36, %s52
    %p54 = scmp.eq.s32.totalorder %s14, 0
    %p55 = por %p53, %p54
    %s56 = ssub.s32 %s16, %s23
    %p57 = scmp.eq.s32.totalorder %s56, 0
    %s59 = sadd.s32 %s58, 1
    %s60 = scalar_select %p57, %s58, %s59
    %p63 = pneg %p57
    %p64 = scmp.eq.s32.totalorder %s8, 1
    %p65 = por %p63, %p64
    %p66 = scmp.ne.s32.totalorder %s58, %s61
    %p67 = scmp.eq.s32.totalorder %s8, 0
    %p68 = por %p66, %p67
    %p69 = scmp.ne.s32.totalorder %s58, %s61
    %p70 = scmp.eq.s32.totalorder %s13, 1
    %p71 = por %p69, %p70
    %p72 = scmp.ne.s32.totalorder %s61, %s62
    %p73 = scmp.eq.s32.totalorder %s13, 0
    %p74 = por %p72, %p73
    %p75 = scmp.ne.s32.totalorder %s61, %s62
    %p76 = scmp.eq.s32.totalorder %s14, 1
    %p77 = por %p75, %p76
    %p79 = scmp.ne.s32.totalorder %s62, %s78
    %p80 = scmp.eq.s32.totalorder %s14, 0
    %p81 = por %p79, %p80
    %s82 = ssub.s32 %s15, %s27
    %p83 = scmp.eq.s32.totalorder %s82, 0
    %s85 = sadd.s32 %s84, 1
    %s86 = scalar_select %p83, %s84, %s85
    %p89 = pneg %p83
    %p90 = scmp.eq.s32.totalorder %s8, 1
    %p91 = por %p89, %p90
    %p92 = scmp.ne.s32.totalorder %s84, %s87
    %p93 = scmp.eq.s32.totalorder %s8, 0
    %p94 = por %p92, %p93
    %p95 = scmp.ne.s32.totalorder %s84, %s87
    %p96 = scmp.eq.s32.totalorder %s13, 1
    %p97 = por %p95, %p96
    %p98 = scmp.ne.s32.totalorder %s87, %s88
    %p99 = scmp.eq.s32.totalorder %s13, 0
    %p100 = por %p98, %p99
    %p101 = scmp.ne.s32.totalorder %s87, %s88
    %p102 = scmp.eq.s32.totalorder %s14, 1
    %p103 = por %p101, %p102
    %p105 = scmp.ne.s32.totalorder %s88, %s104
    %p106 = scmp.eq.s32.totalorder %s14, 0
    %p107 = por %p105, %p106
    %p108 = scmp.le.s32.totalorder 1, %s8
    %p109 = scmp.lt.s32.totalorder %s8, 3
    %p110 = pnand %p108, %p109
    %p111 = pneg %p110
    // Predicated region
    $region9: #{_ppm_impl.2} parent=5 // pred_check
      _
    $region10: #{_ppm_impl.2} parent=5 // pred_check_branch
      %113 = sbr.rel (%p110) target = $region12
    $region11: #{_ppm_impl.2} parent=5 // pred_region
      %s114 = ssub.s32 %s8, 1
      // Predicated region
      $region13: #{_ppm_impl.2} parent=11 // pred_check
        %p115 = pneg %p74
      $region14: #{_ppm_impl.2} parent=11 // pred_check_branch
        %117 = sbr.rel (%p115) target = $region16
      $region15: #{_ppm_impl.2} parent=11 // pred_region
        %s118 = smul.u32 32, %s18
        %p119 = scmp.lt.s32.totalorder %s118, 31
        %s120 = scalar_select %p119, %s118, 31
        %s121 = smul.addr %s120, 8
        %s122 = scalar_lea.vmem %s1, %s121
        %s123 = smul.u32 32, %s18
      $region16: #{_ppm_impl.2} parent=11 // pred_fallthru
        _
    $region12: #{_ppm_impl.2} parent=5 // pred_fallthru
      _
    %p124 = scmp.lt.s32.totalorder %s8, 2
    // Predicated region
    $region17: #{_ppm_impl.2} parent=5 // pred_check
      %p125 = pneg %p124
    $region18: #{_ppm_impl.2} parent=5 // pred_check_branch
      %127 = sbr.rel (%p125) target = $region20
    $region19: #{_ppm_impl.2} parent=5 // pred_region
      // Predicated region
      $region21: #{_ppm_impl.2} parent=19 // pred_check
        %p128 = pneg %p42
      $region22: #{_ppm_impl.2} parent=19 // pred_check_branch
        %130 = sbr.rel (%p128) target = $region24
      $region23: #{_ppm_impl.2} parent=19 // pred_region
        %s131 = smul.u32 2, %s16
        %p132 = scmp.lt.s32.totalorder %s15, 1
        %s133 = scalar_select %p132, %s15, 1
        %p134 = scmp.lt.s32.totalorder %s131, 1
        %s135 = scalar_select %p134, %s131, 1
        %s136 = smul.addr %s133, 2
        %s137 = sadd.s32 %s135, %s136
        %s138 = smul.addr %s137, 8
        %s139 = scalar_lea.vmem %s0, %s138
        %s140 = smul.u32 2, %s16
      $region24: #{_ppm_impl.2} parent=19 // pred_fallthru
        _
    $region20: #{_ppm_impl.2} parent=5 // pred_fallthru
      _
    %p141 = scmp.le.s32.totalorder 1, %s8
    %p142 = scmp.lt.s32.totalorder %s8, 3
    %p143 = pnand %p141, %p142
    %p144 = pneg %p143
    // Predicated region
    $region25: #{_ppm_impl.2} parent=5 // pred_check
      _
    $region26: #{_ppm_impl.2} parent=5 // pred_check_branch
      %146 = sbr.rel (%p143) target = $region28
    $region27: #{_ppm_impl.2} parent=5 // pred_region
      %s147 = ssub.s32 %s8, 1
      %s148 = smul.u32 2, %s18
      %p149 = scmp.lt.s32.totalorder %s17, 1
      %s150 = scalar_select %p149, %s17, 1
      %p151 = scmp.lt.s32.totalorder %s148, 1
      %s152 = scalar_select %p151, %s148, 1
      %s153 = smul.addr %s150, 2
      %s154 = sadd.s32 %s152, %s153
      %s155 = smul.addr %s154, 8
      %s156 = scalar_lea.vmem %s0, %s155
      %p157 = pneg %p48
      %p158 = pneg %p45
      %s159 = smul.u32 32, %s18
      %p160 = scmp.lt.s32.totalorder %s159, 31
      %s161 = scalar_select %p160, %s159, 31
      %s162 = smul.addr %s161, 8
      %s163 = scalar_lea.vmem %s1, %s162
      %p164 = pneg %p74
      %p165 = pneg %p71
      %p166 = pneg %p100
      %p167 = pneg %p97
      %p168 = scmp.lt.s32.totalorder %s17, 1
      %s169 = scalar_select %p168, %s17, 1
      %s170 = smul.addr %s169, 8
      %s171 = scalar_lea.vmem %s2, %s170
      %s172 = smul.u32 2, %s18
      %p173 = scmp.lt.s32.totalorder %s17, 1
      %s174 = scalar_select %p173, %s17, 1
      %p175 = scmp.lt.s32.totalorder %s172, 1
      %s176 = scalar_select %p175, %s172, 1
      %s177 = smul.addr %s174, 2
      %s178 = sadd.s32 %s176, %s177
      %s179 = smul.addr %s178, 8
      %s180 = scalar_lea.vmem %s0, %s179
      %s181 = smul.u32 2, %s18
      %s182 = smul.u32 32, %s18
      %p183 = scmp.lt.s32.totalorder %s182, 31
      %s184 = scalar_select %p183, %s182, 31
      %s185 = smul.addr %s184, 8
      %s186 = scalar_lea.vmem %s1, %s185
      %s187 = smul.u32 32, %s18
      %p188 = scmp.lt.s32.totalorder %s17, 1
      %s189 = scalar_select %p188, %s17, 1
      %s190 = smul.addr %s189, 8
      %s191 = scalar_lea.vmem %s2, %s190
      %p192 = scmp.eq.s32.totalorder %s18, 0
      // Predicated region
      $region29: #{_ppm_impl.2} parent=27 // pred_check
        %p193 = pneg %p192
      $region30: #{_ppm_impl.2} parent=27 // pred_check_branch
        %195 = sbr.rel (%p193) target = $region32
      $region31: #{_ppm_impl.2} parent=27 // pred_region
        %vm196 = vcmask 408576
        %197 = vst.msk [vmem:[%s191] sm:$0xff] %vm196, 0.0
      $region32: #{_ppm_impl.2} parent=27 // pred_fallthru
        _
      %v198 = vld [vmem:[%s180] sm:$0xff]
      %v199 = vld [vmem:[%s180 + $0x8] sm:$0xff]
      %v200 = vld [vmem:[%s186] sm:$0xff]
      %v201 = vld [vmem:[%s186 + $0x8] sm:$0xff]
      %v202 = vld [vmem:[%s186 + $0x10] sm:$0xff]
      %v203 = vld [vmem:[%s186 + $0x18] sm:$0xff]
      %v204 = vld [vmem:[%s186 + $0x20] sm:$0xff]
      %v205 = vld [vmem:[%s186 + $0x28] sm:$0xff]
      %v206 = vld [vmem:[%s186 + $0x30] sm:$0xff]
      %v207 = vld [vmem:[%s186 + $0x38] sm:$0xff]
      %v208 = vld [vmem:[%s186 + $0x40] sm:$0xff]
      %v209 = vld [vmem:[%s186 + $0x48] sm:$0xff]
      %v210 = vld [vmem:[%s186 + $0x50] sm:$0xff]
      %v211 = vld [vmem:[%s186 + $0x58] sm:$0xff]
      %v212 = vld [vmem:[%s186 + $0x60] sm:$0xff]
      %v213 = vld [vmem:[%s186 + $0x68] sm:$0xff]
      %v214 = vld [vmem:[%s186 + $0x70] sm:$0xff]
      %v215 = vld [vmem:[%s186 + $0x78] sm:$0xff]
      %v216 = vld [vmem:[%s186 + $0x80] sm:$0xff]
      %v217 = vld [vmem:[%s186 + $0x88] sm:$0xff]
      %v218 = vld [vmem:[%s186 + $0x90] sm:$0xff]
      %v219 = vld [vmem:[%s186 + $0x98] sm:$0xff]
      %v220 = vld [vmem:[%s186 + $0xa0] sm:$0xff]
      %v221 = vld [vmem:[%s186 + $0xa8] sm:$0xff]
      %v222 = vld [vmem:[%s186 + $0xb0] sm:$0xff]
      %v223 = vld [vmem:[%s186 + $0xb8] sm:$0xff]
      %v224 = vld [vmem:[%s186 + $0xc0] sm:$0xff]
      %v225 = vld [vmem:[%s186 + $0xc8] sm:$0xff]
      %v226 = vld [vmem:[%s186 + $0xd0] sm:$0xff]
      %v227 = vld [vmem:[%s186 + $0xd8] sm:$0xff]
      %v228 = vld [vmem:[%s186 + $0xe0] sm:$0xff]
      %v229 = vld [vmem:[%s186 + $0xe8] sm:$0xff]
      %v230 = vld [vmem:[%s186 + $0xf0] sm:$0xff]
      %v231 = vld [vmem:[%s186 + $0xf8] sm:$0xff]
      %232 = vmatprep.subr.mxu0 0.0
      %233 = vmatpush1.msra.mxu0 %v200
      %234 = vmatprep.subr.mxu0 0.0
      %235 = vmatpush1.msra.mxu0 %v201
      %236 = vmatprep.subr.mxu0 0.0
      %237 = vmatpush1.msra.mxu0 %v202
      %238 = vmatprep.subr.mxu0 0.0
      %239 = vmatpush1.msra.mxu0 %v203
      %240 = vmatprep.subr.mxu0 0.0
      %241 = vmatpush1.msra.mxu0 %v204
      %242 = vmatprep.subr.mxu0 0.0
      %243 = vmatpush1.msra.mxu0 %v205
      %244 = vmatprep.subr.mxu0 0.0
      %245 = vmatpush1.msra.mxu0 %v206
      %246 = vmatprep.subr.mxu0 0.0
      %247 = vmatpush1.msra.mxu0 %v207
      %248 = vmatprep.subr.mxu0 0.0
      %249 = vmatpush1.msra.mxu0 %v208
      %250 = vmatprep.subr.mxu0 0.0
      %251 = vmatpush1.msra.mxu0 %v209
      %252 = vmatprep.subr.mxu0 0.0
      %253 = vmatpush1.msra.mxu0 %v210
      %254 = vmatprep.subr.mxu0 0.0
      %255 = vmatpush1.msra.mxu0 %v211
      %256 = vmatprep.subr.mxu0 0.0
      %257 = vmatpush1.msra.mxu0 %v212
      %258 = vmatprep.subr.mxu0 0.0
      %259 = vmatpush1.msra.mxu0 %v213
      %260 = vmatprep.subr.mxu0 0.0
      %261 = vmatpush1.msra.mxu0 %v214
      %262 = vmatprep.subr.mxu0 0.0
      %263 = vmatpush1.msra.mxu0 %v215
      %264 = vmatprep.subr.mxu0 0.0
      %265 = vmatpush1.msra.mxu0 %v216
      %266 = vmatprep.subr.mxu0 0.0
      %267 = vmatpush1.msra.mxu0 %v217
      %268 = vmatprep.subr.mxu0 0.0
      %269 = vmatpush1.msra.mxu0 %v218
      %270 = vmatprep.subr.mxu0 0.0
      %271 = vmatpush1.msra.mxu0 %v219
      %272 = vmatprep.subr.mxu0 0.0
      %273 = vmatpush1.msra.mxu0 %v220
      %274 = vmatprep.subr.mxu0 0.0
      %275 = vmatpush1.msra.mxu0 %v221
      %276 = vmatprep.subr.mxu0 0.0
      %277 = vmatpush1.msra.mxu0 %v222
      %278 = vmatprep.subr.mxu0 0.0
      %279 = vmatpush1.msra.mxu0 %v223
      %280 = vmatprep.subr.mxu0 0.0
      %281 = vmatpush1.msra.mxu0 %v224
      %282 = vmatprep.subr.mxu0 0.0
      %283 = vmatpush1.msra.mxu0 %v225
      %284 = vmatprep.subr.mxu0 0.0
      %285 = vmatpush1.msra.mxu0 %v226
      %286 = vmatprep.subr.mxu0 0.0
      %287 = vmatpush1.msra.mxu0 %v227
      %288 = vmatprep.subr.mxu0 0.0
      %289 = vmatpush1.msra.mxu0 %v228
      %290 = vmatprep.subr.mxu0 0.0
      %291 = vmatpush1.msra.mxu0 %v229
      %292 = vmatprep.subr.mxu0 0.0
      %293 = vmatpush1.msra.mxu0 %v230
      %294 = vmatprep.subr.mxu0 0.0
      %295 = vmatpush1.msra.mxu0 %v231
      %296 = vmatprep.mubr.f32.mxu0 %v199
      %297 = vmatmul.mubr.f32.gmra.mrb[0].mxu0 %v198
      %v298 = vpop.f32.mrb[0].mxu0
      %v299 = vadd.f32 0.0, %v298
      %v300 = vpop.f32.mrb[0].mxu0
      %301 = vdwg.mxu0
      %v302 = vld [vmem:[%s191] sm:$0xff]
      %v303 = vadd.f32 %v302, %v299
      %vm304 = vcmask 408576
      %305 = vst.msk [vmem:[%s191] sm:$0xff] %vm304, %v303
      %p306 = scmp.lt.s32.totalorder %s17, 1
      %s307 = scalar_select %p306, %s17, 1
      %s308 = smul.addr %s307, 8
      %s309 = scalar_lea.vmem %s2, %s308
      // Predicated region
      $region33: #{_ppm_impl.2} parent=27 // pred_check
        %p310 = pneg %p97
      $region34: #{_ppm_impl.2} parent=27 // pred_check_branch
        %312 = sbr.rel (%p310) target = $region36
      $region35: #{_ppm_impl.2} parent=27 // pred_region
        _
      $region36: #{_ppm_impl.2} parent=27 // pred_fallthru
        _
    $region28: #{_ppm_impl.2} parent=5 // pred_fallthru
      _
    %p313 = scmp.le.s32.totalorder 2, %s8
    // Predicated region
    $region37: #{_ppm_impl.2} parent=5 // pred_check
      %p314 = pneg %p313
    $region38: #{_ppm_impl.2} parent=5 // pred_check_branch
      %316 = sbr.rel (%p314) target = $region40
    $region39: #{_ppm_impl.2} parent=5 // pred_region
      %s317 = ssub.s32 %s8, 2
      // Predicated region
      $region41: #{_ppm_impl.2} parent=39 // pred_check
        %p318 = pneg %p103
      $region42: #{_ppm_impl.2} parent=39 // pred_check_branch
        %320 = sbr.rel (%p318) target = $region44
      $region43: #{_ppm_impl.2} parent=39 // pred_region
        %p321 = scmp.lt.s32.totalorder %s19, 1
        %s322 = scalar_select %p321, %s19, 1
        %s323 = smul.addr %s322, 8
        %s324 = scalar_lea.vmem %s2, %s323
      $region44: #{_ppm_impl.2} parent=39 // pred_fallthru
        _
    $region40: #{_ppm_impl.2} parent=5 // pred_fallthru
      _
  $region6: #{_ppm_impl.2} parent=0 // loop_footer
    %s12 = sadd.s32 1, %s8
  $region7: #{_ppm_impl.2} parent=0 // loop_footer_branch
    %7 = sbr.rel target = $region3
  $region8: #{_ppm_impl.2} parent=0 // loop_exit
    _

// kernel: _ppm_impl.3
$region0: #{_ppm_impl.3}
  #allocation0 [shape = 'u32[]', space=smem, size = 0x4, offset = 0x4, fixed_abs, tag = 'smem constant byte address 0x4 - core index']
  #allocation1 [shape = 'u32[144,128]{1,0:T(1,128)}', space=vmem, size = 0x12000, scoped, tag = 'internal scratch']
  %s0 = inlined_call_operand.vmem [shape: f32[2,8,256], index: 0, kind: input, shape index: {}]
  %s1 = inlined_call_operand.vmem [shape: f32[2,8,50], index: 1, kind: input, shape index: {}]
  %s2 = inlined_call_operand.vmem [shape: f32[8,8], index: 2, kind: input, shape index: {}]
  %s3 = inlined_call_operand.vmem [shape: f32[8,1], index: 3, kind: input, shape index: {}]
  %s4 = inlined_call_operand.vmem [shape: f32[50,256], index: 4, kind: input, shape index: {}]
  %s5 = inlined_call_operand.hbm [shape: f32[2,16,256], index: 5, kind: output, shape index: {}]
  %s6 = sld [smem:[#allocation0]]
  $region53: #{_ppm_impl.3} parent=0
    _
  %s8 = ssub.s32 1, %s6
  %s9 = scalar_select 0, %s8, %s6
  $region1: #{_ppm_impl.3} parent=0
    #allocation2 [shape = 'u8[32768]{0}', space=vmem, size = 0x8000, scoped, tag = 'output window, operand 0']
    #allocation3 [shape = 's32[2]{0}', space=sflag, size = 0x8, scoped, tag = 'scoped memory for _ppm_impl.3']
    %10 = vsyncpa [#allocation3], 0
    %s11 = scalar_lea.sflag [#allocation3], 1
    %12 = vsyncpa %s11, 0
    loop: start=0, step=1, limit=4
    $region2: #{_ppm_impl.3} parent=1 // loop_pre_header
      _
    $region3: #{_ppm_impl.3} parent=1 // loop_header
      %s14 = sphi 0, %s18
      %p15 = scmp.ge.s32.totalorder %s14, 4
      %s21 = sphi 0, %s33
      %s22 = sphi 0, %s29
      %s23 = sphi 0, %s21
      %s24 = sphi 0, %s22
      %s25 = sphi 0, %s23
      %s26 = sphi 0, %s24
      %s38 = sphi 0, %s40
      %s41 = sphi 0, %s38
      %s42 = sphi 0, %s41
      %s58 = sphi 0, %s42
      %s64 = sphi 0, %s66
      %s67 = sphi 0, %s64
      %s68 = sphi 0, %s67
      %s84 = sphi 0, %s68
      %s88 = sphi 0, %s88
      %s90 = sphi 0, %s88
      %s91 = sphi 0, %s90
      %s105 = sphi 0, %s91
      %s109 = sphi 0, %s109
      %s111 = sphi 0, %s109
      %s112 = sphi 0, %s111
      %s126 = sphi 0, %s112
      %s132 = sphi 0, %s134
      %s135 = sphi 0, %s132
      %s136 = sphi 0, %s135
      %s152 = sphi 0, %s136
      %s160 = sphi 0, %s162
      %s163 = sphi 0, %s160
      %s164 = sphi 0, %s163
      %s180 = sphi 0, %s164
    $region4: #{_ppm_impl.3} parent=1 // loop_header_branch
      %17 = sbr.rel (%p15) target = $region8
    $region5: #{_ppm_impl.3} parent=1 // loop_body
      %s19 = ssub.s32 %s14, 1
      %s20 = ssub.s32 %s14, 2
      %s27 = sadd.s32 1, %s22
      %p28 = scmp.ge.s32.totalorder %s27, 1
      %s29 = scalar_select %p28, 0, %s27
      %s30 = sadd.s32 1, %s21
      %s31 = scalar_select %p28, %s30, %s21
      %p32 = scmp.ge.s32.totalorder %s31, 2
      %s33 = scalar_select %p32, 0, %s31
      %s34 = ssub.s32 %s21, %s33
      %s35 = ssub.s32 %s22, %s29
      %s36 = sor.u32 %s34, %s35
      %p37 = scmp.eq.s32.totalorder %s36, 0
      %s39 = sadd.s32 %s38, 1
      %s40 = scalar_select %p37, %s38, %s39
      %p43 = pneg %p37
      %p44 = scmp.eq.s32.totalorder %s14, 1
      %p45 = por %p43, %p44
      %p46 = scmp.ne.s32.totalorder %s38, %s41
      %p47 = scmp.eq.s32.totalorder %s14, 0
      %p48 = por %p46, %p47
      %p49 = scmp.ne.s32.totalorder %s38, %s41
      %p50 = scmp.eq.s32.totalorder %s19, 1
      %p51 = por %p49, %p50
      %p52 = scmp.ne.s32.totalorder %s41, %s42
      %p53 = scmp.eq.s32.totalorder %s19, 0
      %p54 = por %p52, %p53
      %p55 = scmp.ne.s32.totalorder %s41, %s42
      %p56 = scmp.eq.s32.totalorder %s20, 1
      %p57 = por %p55, %p56
      %p59 = scmp.ne.s32.totalorder %s42, %s58
      %p60 = scmp.eq.s32.totalorder %s20, 0
      %p61 = por %p59, %p60
      %s62 = ssub.s32 %s21, %s33
      %p63 = scmp.eq.s32.totalorder %s62, 0
      %s65 = sadd.s32 %s64, 1
      %s66 = scalar_select %p63, %s64, %s65
      %p69 = pneg %p63
      %p70 = scmp.eq.s32.totalorder %s14, 1
      %p71 = por %p69, %p70
      %p72 = scmp.ne.s32.totalorder %s64, %s67
      %p73 = scmp.eq.s32.totalorder %s14, 0
      %p74 = por %p72, %p73
      %p75 = scmp.ne.s32.totalorder %s64, %s67
      %p76 = scmp.eq.s32.totalorder %s19, 1
      %p77 = por %p75, %p76
      %p78 = scmp.ne.s32.totalorder %s67, %s68
      %p79 = scmp.eq.s32.totalorder %s19, 0
      %p80 = por %p78, %p79
      %p81 = scmp.ne.s32.totalorder %s67, %s68
      %p82 = scmp.eq.s32.totalorder %s20, 1
      %p83 = por %p81, %p82
      %p85 = scmp.ne.s32.totalorder %s68, %s84
      %p86 = scmp.eq.s32.totalorder %s20, 0
      %p87 = por %p85, %p86
      %s89 = sadd.s32 %s88, 1
      %p92 = scmp.eq.s32.totalorder %s14, 1
      %p93 = scmp.ne.s32.totalorder %s88, %s90
      %p94 = scmp.eq.s32.totalorder %s14, 0
      %p95 = por %p93, %p94
      %p96 = scmp.ne.s32.totalorder %s88, %s90
      %p97 = scmp.eq.s32.totalorder %s19, 1
      %p98 = por %p96, %p97
      %p99 = scmp.ne.s32.totalorder %s90, %s91
      %p100 = scmp.eq.s32.totalorder %s19, 0
      %p101 = por %p99, %p100
      %p102 = scmp.ne.s32.totalorder %s90, %s91
      %p103 = scmp.eq.s32.totalorder %s20, 1
      %p104 = por %p102, %p103
      %p106 = scmp.ne.s32.totalorder %s91, %s105
      %p107 = scmp.eq.s32.totalorder %s20, 0
      %p108 = por %p106, %p107
      %s110 = sadd.s32 %s109, 1
      %p113 = scmp.eq.s32.totalorder %s14, 1
      %p114 = scmp.ne.s32.totalorder %s109, %s111
      %p115 = scmp.eq.s32.totalorder %s14, 0
      %p116 = por %p114, %p115
      %p117 = scmp.ne.s32.totalorder %s109, %s111
      %p118 = scmp.eq.s32.totalorder %s19, 1
      %p119 = por %p117, %p118
      %p120 = scmp.ne.s32.totalorder %s111, %s112
      %p121 = scmp.eq.s32.totalorder %s19, 0
      %p122 = por %p120, %p121
      %p123 = scmp.ne.s32.totalorder %s111, %s112
      %p124 = scmp.eq.s32.totalorder %s20, 1
      %p125 = por %p123, %p124
      %p127 = scmp.ne.s32.totalorder %s112, %s126
      %p128 = scmp.eq.s32.totalorder %s20, 0
      %p129 = por %p127, %p128
      %s130 = ssub.s32 %s22, %s29
      %p131 = scmp.eq.s32.totalorder %s130, 0
      %s133 = sadd.s32 %s132, 1
      %s134 = scalar_select %p131, %s132, %s133
      %p137 = pneg %p131
      %p138 = scmp.eq.s32.totalorder %s14, 1
      %p139 = por %p137, %p138
      %p140 = scmp.ne.s32.totalorder %s132, %s135
      %p141 = scmp.eq.s32.totalorder %s14, 0
      %p142 = por %p140, %p141
      %p143 = scmp.ne.s32.totalorder %s132, %s135
      %p144 = scmp.eq.s32.totalorder %s19, 1
      %p145 = por %p143, %p144
      %p146 = scmp.ne.s32.totalorder %s135, %s136
      %p147 = scmp.eq.s32.totalorder %s19, 0
      %p148 = por %p146, %p147
      %p149 = scmp.ne.s32.totalorder %s135, %s136
      %p150 = scmp.eq.s32.totalorder %s20, 1
      %p151 = por %p149, %p150
      %p153 = scmp.ne.s32.totalorder %s136, %s152
      %p154 = scmp.eq.s32.totalorder %s20, 0
      %p155 = por %p153, %p154
      %s156 = ssub.s32 %s21, %s33
      %s157 = ssub.s32 %s22, %s29
      %s158 = sor.u32 %s156, %s157
      %p159 = scmp.eq.s32.totalorder %s158, 0
      %s161 = sadd.s32 %s160, 1
      %s162 = scalar_select %p159, %s160, %s161
      %p165 = pneg %p159
      %p166 = scmp.eq.s32.totalorder %s14, 1
      %p167 = por %p165, %p166
      %p168 = scmp.ne.s32.totalorder %s160, %s163
      %p169 = scmp.eq.s32.totalorder %s14, 0
      %p170 = por %p168, %p169
      %p171 = scmp.ne.s32.totalorder %s160, %s163
      %p172 = scmp.eq.s32.totalorder %s19, 1
      %p173 = por %p171, %p172
      %p174 = scmp.ne.s32.totalorder %s163, %s164
      %p175 = scmp.eq.s32.totalorder %s19, 0
      %p176 = por %p174, %p175
      %p177 = scmp.ne.s32.totalorder %s163, %s164
      %p178 = scmp.eq.s32.totalorder %s20, 1
      %p179 = por %p177, %p178
      %p181 = scmp.ne.s32.totalorder %s164, %s180
      %p182 = scmp.eq.s32.totalorder %s20, 0
      %p183 = por %p181, %p182
      %p184 = scmp.le.s32.totalorder 1, %s14
      %p185 = scmp.lt.s32.totalorder %s14, 3
      %p186 = pnand %p184, %p185
      %p187 = pneg %p186
      // Predicated region
      $region9: #{_ppm_impl.3} parent=5 // pred_check
        _
      $region10: #{_ppm_impl.3} parent=5 // pred_check_branch
        %189 = sbr.rel (%p186) target = $region12
      $region11: #{_ppm_impl.3} parent=5 // pred_region
        %s190 = ssub.s32 %s14, 1
        // Predicated region
        $region13: #{_ppm_impl.3} parent=11 // pred_check
          %p191 = pneg %p101
        $region14: #{_ppm_impl.3} parent=11 // pred_check_branch
          %193 = sbr.rel (%p191) target = $region16
        $region15: #{_ppm_impl.3} parent=11 // pred_region
          _
        $region16: #{_ppm_impl.3} parent=11 // pred_fallthru
          _
        // Predicated region
        $region17: #{_ppm_impl.3} parent=11 // pred_check
          %p194 = pneg %p122
        $region18: #{_ppm_impl.3} parent=11 // pred_check_branch
          %196 = sbr.rel (%p194) target = $region20
        $region19: #{_ppm_impl.3} parent=11 // pred_region
          _
        $region20: #{_ppm_impl.3} parent=11 // pred_fallthru
          _
        // Predicated region
        $region21: #{_ppm_impl.3} parent=11 // pred_check
          %p197 = pneg %p148
        $region22: #{_ppm_impl.3} parent=11 // pred_check_branch
          %199 = sbr.rel (%p197) target = $region24
        $region23: #{_ppm_impl.3} parent=11 // pred_region
          %s200 = smul.u32 2, %s24
          %p201 = scmp.lt.s32.totalorder %s200, 1
          %s202 = scalar_select %p201, %s200, 1
          %s203 = smul.addr %s202, 8
          %s204 = scalar_lea.vmem %s4, %s203
          %s205 = smul.u32 2, %s24
        $region24: #{_ppm_impl.3} parent=11 // pred_fallthru
          _
      $region12: #{_ppm_impl.3} parent=5 // pred_fallthru
        _
      %p206 = scmp.lt.s32.totalorder %s14, 2
      // Predicated region
      $region25: #{_ppm_impl.3} parent=5 // pred_check
        %p207 = pneg %p206
      $region26: #{_ppm_impl.3} parent=5 // pred_check_branch
        %209 = sbr.rel (%p207) target = $region28
      $region27: #{_ppm_impl.3} parent=5 // pred_region
        // Predicated region
        $region29: #{_ppm_impl.3} parent=27 // pred_check
          %p210 = pneg %p48
        $region30: #{_ppm_impl.3} parent=27 // pred_check_branch
          %212 = sbr.rel (%p210) target = $region32
        $region31: #{_ppm_impl.3} parent=27 // pred_region
          %s213 = smul.u32 2, %s22
          %p214 = scmp.lt.s32.totalorder %s21, 1
          %s215 = scalar_select %p214, %s21, 1
          %p216 = scmp.lt.s32.totalorder %s213, 1
          %s217 = scalar_select %p216, %s213, 1
          %s218 = smul.addr %s215, 2
          %s219 = sadd.s32 %s217, %s218
          %s220 = smul.addr %s219, 8
          %s221 = scalar_lea.vmem %s0, %s220
          %s222 = smul.u32 2, %s22
        $region32: #{_ppm_impl.3} parent=27 // pred_fallthru
          _
        // Predicated region
        $region33: #{_ppm_impl.3} parent=27 // pred_check
          %p223 = pneg %p74
        $region34: #{_ppm_impl.3} parent=27 // pred_check_branch
          %225 = sbr.rel (%p223) target = $region36
        $region35: #{_ppm_impl.3} parent=27 // pred_region
          %p226 = scmp.lt.s32.totalorder %s21, 1
          %s227 = scalar_select %p226, %s21, 1
          %s228 = smul.addr %s227, 8
          %s229 = scalar_lea.vmem %s1, %s228
        $region36: #{_ppm_impl.3} parent=27 // pred_fallthru
          _
      $region28: #{_ppm_impl.3} parent=5 // pred_fallthru
        _
      %p230 = scmp.le.s32.totalorder 1, %s14
      %p231 = scmp.lt.s32.totalorder %s14, 3
      %p232 = pnand %p230, %p231
      %p233 = pneg %p232
      // Predicated region
      $region37: #{_ppm_impl.3} parent=5 // pred_check
        _
      $region38: #{_ppm_impl.3} parent=5 // pred_check_branch
        %235 = sbr.rel (%p232) target = $region40
      $region39: #{_ppm_impl.3} parent=5 // pred_region
        %s236 = ssub.s32 %s14, 1
        %s237 = smul.u32 2, %s24
        %p238 = scmp.lt.s32.totalorder %s23, 1
        %s239 = scalar_select %p238, %s23, 1
        %p240 = scmp.lt.s32.totalorder %s237, 1
        %s241 = scalar_select %p240, %s237, 1
        %s242 = smul.addr %s239, 2
        %s243 = sadd.s32 %s241, %s242
        %s244 = smul.addr %s243, 8
        %s245 = scalar_lea.vmem %s0, %s244
        %p246 = pneg %p54
        %p247 = pneg %p51
        %p248 = scmp.lt.s32.totalorder %s23, 1
        %s249 = scalar_select %p248, %s23, 1
        %s250 = smul.addr %s249, 8
        %s251 = scalar_lea.vmem %s1, %s250
        %p252 = pneg %p80
        %p253 = pneg %p77
        %p254 = pneg %p101
        %p255 = pneg %p98
        %p256 = pneg %p122
        %p257 = pneg %p119
        %s258 = smul.u32 2, %s24
        %p259 = scmp.lt.s32.totalorder %s258, 1
        %s260 = scalar_select %p259, %s258, 1
        %s261 = smul.addr %s260, 8
        %s262 = scalar_lea.vmem %s4, %s261
        %p263 = pneg %p148
        %p264 = pneg %p145
        %p265 = pneg %p176
        %p266 = pneg %p173
        %s267 = sand.u32 %s163, 1
        %s268 = scalar_lea.sflag [#allocation3], %s267
        %s269 = sand.u32 %s163, 1
        %s270 = smul.addr %s269, 32
        %s271 = scalar_lea.vmem [#allocation2], %s270
        %s272 = smul.u32 2, %s24
        %p273 = scmp.lt.s32.totalorder %s23, 1
        %s274 = scalar_select %p273, %s23, 1
        %p275 = scmp.lt.s32.totalorder %s272, 1
        %s276 = scalar_select %p275, %s272, 1
        %s277 = smul.addr %s274, 2
        %s278 = sadd.s32 %s276, %s277
        %s279 = smul.addr %s278, 8
        %s280 = scalar_lea.vmem %s0, %s279
        %s281 = smul.u32 2, %s24
        %p282 = scmp.lt.s32.totalorder %s23, 1
        %s283 = scalar_select %p282, %s23, 1
        %s284 = smul.addr %s283, 8
        %s285 = scalar_lea.vmem %s1, %s284
        %s286 = smul.u32 2, %s24
        %p287 = scmp.lt.s32.totalorder %s286, 1
        %s288 = scalar_select %p287, %s286, 1
        %s289 = smul.addr %s288, 8
        %s290 = scalar_lea.vmem %s4, %s289
        %s291 = smul.u32 2, %s24
        %s292 = smul.u32 2, %s24
        %v293 = vld [vmem:[%s285] sm:$0xff]
        %v294 = vld [vmem:[%s2] sm:$0xff]
        %v295 = vld [vmem:[%s3] sm:$0xff]
        %v296 = vld [vmem:[%s290] sm:$0xff]
        %v297 = vld [vmem:[%s290 + $0x8] sm:$0xff]
        %v298 = vld [vmem:[%s290 + $0x10] sm:$0xff]
        %v299 = vld [vmem:[%s290 + $0x18] sm:$0xff]
        %v300 = vld [vmem:[%s290 + $0x20] sm:$0xff]
        %v301 = vld [vmem:[%s290 + $0x28] sm:$0xff]
        %v302 = vld [vmem:[%s290 + $0x30] sm:$0xff]
        %v303 = vld [vmem:[%s290 + $0x38] sm:$0xff]
        %v304 = vld [vmem:[%s290 + $0x40] sm:$0xff]
        %v305 = vld [vmem:[%s290 + $0x48] sm:$0xff]
        %v306 = vld [vmem:[%s290 + $0x50] sm:$0xff]
        %v307 = vld [vmem:[%s290 + $0x58] sm:$0xff]
        %v308 = vld [vmem:[%s290 + $0x60] sm:$0x3]
        %v309 = vld [vmem:[%s290 + $0x68] sm:$0x3]
        %v310 = vld [vmem:[%s280] sm:$0xff]
        %v311 = vld [vmem:[%s280 + $0x8] sm:$0xff]
        %vm312 = vcmask 64512
        %v314 = vsel %vm312, %v294, 0
        %316 = vmatprep.subr.mxu0 0.0
        %317 = vmatpush1.msra.mxu0 %v293
        %318 = vmatprep.subr.mxu0 0.0
        %319 = vmatpush1.msra.mxu0 0.0
        %320 = vmatprep.subr.mxu0 0.0
        %321 = vmatpush1.msra.mxu0 0.0
        %322 = vmatprep.subr.mxu0 0.0
        %323 = vmatpush1.msra.mxu0 0.0
        %324 = vmatprep.subr.mxu0 0.0
        %325 = vmatpush1.msra.mxu0 0.0
        %326 = vmatprep.subr.mxu0 0.0
        %327 = vmatpush1.msra.mxu0 0.0
        %328 = vmatprep.subr.mxu0 0.0
        %329 = vmatpush1.msra.mxu0 0.0
        %330 = vmatprep.subr.mxu0 0.0
        %331 = vmatpush1.msra.mxu0 0.0
        %332 = vmatprep.subr.mxu0 0.0
        %333 = vmatpush1.msra.mxu0 0.0
        %334 = vmatprep.subr.mxu0 0.0
        %335 = vmatpush1.msra.mxu0 0.0
        %336 = vmatprep.subr.mxu0 0.0
        %337 = vmatpush1.msra.mxu0 0.0
        %338 = vmatprep.subr.mxu0 0.0
        %339 = vmatpush1.msra.mxu0 0.0
        %340 = vmatprep.subr.mxu0 0.0
        %341 = vmatpush1.msra.mxu0 0.0
        %342 = vmatprep.subr.mxu0 0.0
        %343 = vmatpush1.msra.mxu0 0.0
        %344 = vmatprep.subr.mxu0 0.0
        %345 = vmatpush1.msra.mxu0 0.0
        %346 = vmatprep.subr.mxu0 0.0
        %347 = vmatpush1.msra.mxu0 0.0
        %348 = vmatprep.subr.mxu0 0.0
        %349 = vmatpush1.msra.mxu0 0.0
        %350 = vmatprep.subr.mxu0 0.0
        %351 = vmatpush1.msra.mxu0 0.0
        %352 = vmatprep.subr.mxu0 0.0
        %353 = vmatpush1.msra.mxu0 0.0
        %354 = vmatprep.subr.mxu0 0.0
        %355 = vmatpush1.msra.mxu0 0.0
        %356 = vmatprep.subr.mxu0 0.0
        %357 = vmatpush1.msra.mxu0 0.0
        %358 = vmatprep.subr.mxu0 0.0
        %359 = vmatpush1.msra.mxu0 0.0
        %360 = vmatprep.subr.mxu0 0.0
        %361 = vmatpush1.msra.mxu0 0.0
        %362 = vmatprep.subr.mxu0 0.0
        %363 = vmatpush1.msra.mxu0 0.0
        %364 = vmatprep.subr.mxu0 0.0
        %365 = vmatpush1.msra.mxu0 0.0
        %366 = vmatprep.subr.mxu0 0.0
        %367 = vmatpush1.msra.mxu0 0.0
        %368 = vmatprep.subr.mxu0 0.0
        %369 = vmatpush1.msra.mxu0 0.0
        %370 = vmatprep.subr.mxu0 0.0
        %371 = vmatpush1.msra.mxu0 0.0
        %372 = vmatprep.subr.mxu0 0.0
        %373 = vmatpush1.msra.mxu0 0.0
        %374 = vmatprep.subr.mxu0 0.0
        %375 = vmatpush1.msra.mxu0 0.0
        %376 = vmatprep.subr.mxu0 0.0
        %377 = vmatpush1.msra.mxu0 0.0
        %378 = vmatprep.subr.mxu0 0.0
        %379 = vmatpush1.msra.mxu0 0.0
        %380 = vmatprep.mubr.f32.mxu0 0.0
        %381 = vmatmul.mubr.f32.gmra.mrb[0].mxu0 %v314
        %v382 = vpop.f32.mrb[0].mxu0
        %v383 = vadd.f32 %v295, %v382
        %v384 = vpop.f32.mrb[0].mxu0
        %385 = vdwg.mxu0
        %v386 = vmax.f32 %v383, 0.0
        %vm387 = vcmask 7168
        %v389 = vsel %vm387, %v386, 0
        %vm391 = vcmask 1040384
        %v393 = vsel %vm391, %v296, 0
        %v396 = vsel %vm391, %v297, 0
        %398 = vmatprep.subr.mxu0 %v396
        %399 = vmatpush1.msra.mxu0 %v393
        %400 = vmatprep.subr.mxu0 0.0
        %401 = vmatpush1.msra.mxu0 0.0
        %402 = vmatprep.subr.mxu0 0.0
        %403 = vmatpush1.msra.mxu0 0.0
        %404 = vmatprep.subr.mxu0 0.0
        %405 = vmatpush1.msra.mxu0 0.0
        %406 = vmatprep.subr.mxu0 0.0
        %407 = vmatpush1.msra.mxu0 0.0
        %408 = vmatprep.subr.mxu0 0.0
        %409 = vmatpush1.msra.mxu0 0.0
        %410 = vmatprep.subr.mxu0 0.0
        %411 = vmatpush1.msra.mxu0 0.0
        %412 = vmatprep.subr.mxu0 0.0
        %413 = vmatpush1.msra.mxu0 0.0
        %414 = vmatprep.subr.mxu0 0.0
        %415 = vmatpush1.msra.mxu0 0.0
        %416 = vmatprep.subr.mxu0 0.0
        %417 = vmatpush1.msra.mxu0 0.0
        %418 = vmatprep.subr.mxu0 0.0
        %419 = vmatpush1.msra.mxu0 0.0
        %420 = vmatprep.subr.mxu0 0.0
        %421 = vmatpush1.msra.mxu0 0.0
        %422 = vmatprep.subr.mxu0 0.0
        %423 = vmatpush1.msra.mxu0 0.0
        %424 = vmatprep.subr.mxu0 0.0
        %425 = vmatpush1.msra.mxu0 0.0
        %426 = vmatprep.subr.mxu0 0.0
        %427 = vmatpush1.msra.mxu0 0.0
        %428 = vmatprep.subr.mxu0 0.0
        %429 = vmatpush1.msra.mxu0 0.0
        %430 = vmatprep.subr.mxu0 0.0
        %431 = vmatpush1.msra.mxu0 0.0
        %432 = vmatprep.subr.mxu0 0.0
        %433 = vmatpush1.msra.mxu0 0.0
        %434 = vmatprep.subr.mxu0 0.0
        %435 = vmatpush1.msra.mxu0 0.0
        %436 = vmatprep.subr.mxu0 0.0
        %437 = vmatpush1.msra.mxu0 0.0
        %438 = vmatprep.subr.mxu0 0.0
        %439 = vmatpush1.msra.mxu0 0.0
        %440 = vmatprep.subr.mxu0 0.0
        %441 = vmatpush1.msra.mxu0 0.0
        %442 = vmatprep.subr.mxu0 0.0
        %443 = vmatpush1.msra.mxu0 0.0
        %444 = vmatprep.subr.mxu0 0.0
        %445 = vmatpush1.msra.mxu0 0.0
        %446 = vmatprep.subr.mxu0 0.0
        %447 = vmatpush1.msra.mxu0 0.0
        %448 = vmatprep.subr.mxu0 0.0
        %449 = vmatpush1.msra.mxu0 0.0
        %450 = vmatprep.subr.mxu0 0.0
        %451 = vmatpush1.msra.mxu0 0.0
        %452 = vmatprep.subr.mxu0 0.0
        %453 = vmatpush1.msra.mxu0 0.0
        %454 = vmatprep.subr.mxu0 0.0
        %455 = vmatpush1.msra.mxu0 0.0
        %456 = vmatprep.subr.mxu0 0.0
        %457 = vmatpush1.msra.mxu0 0.0
        %458 = vmatprep.subr.mxu0 0.0
        %459 = vmatpush1.msra.mxu0 0.0
        %460 = vmatprep.subr.mxu0 0.0
        %461 = vmatpush1.msra.mxu0 0.0
        %462 = vmatprep.mubr.f32.mxu0 0.0
        %463 = vmatmul.mubr.f32.gmra.mrb[0].mxu0 %v389
        %v464 = vpop.f32.mrb[0].mxu0
        %v465 = vadd.f32 0.0, %v464
        %v466 = vpop.f32.mrb[0].mxu0
        %v467 = vadd.f32 0.0, %v466
        %468 = vdwg.mxu0
        %470 = vset.pattern.permute.xlu0 0
        %471 = vperm.xlu0 %470, %v295
        %v472 = vpop.permute.xlu0 %471
        %v473 = vrot.slane %v294, 2
        %475 = vrot.lane.b32.xlu0 %v293, 127
        %v476 = vpop.permute.xlu0 %475
        %v478 = vrot.slane %v472, 2
        %v480 = vsel %vm312, %v473, 0
        %482 = vmatprep.subr.mxu0 0.0
        %483 = vmatpush1.msra.mxu0 %v476
        %484 = vmatprep.subr.mxu0 0.0
        %485 = vmatpush1.msra.mxu0 0.0
        %486 = vmatprep.subr.mxu0 0.0
        %487 = vmatpush1.msra.mxu0 0.0
        %488 = vmatprep.subr.mxu0 0.0
        %489 = vmatpush1.msra.mxu0 0.0
        %490 = vmatprep.subr.mxu0 0.0
        %491 = vmatpush1.msra.mxu0 0.0
        %492 = vmatprep.subr.mxu0 0.0
        %493 = vmatpush1.msra.mxu0 0.0
        %494 = vmatprep.subr.mxu0 0.0
        %495 = vmatpush1.msra.mxu0 0.0
        %496 = vmatprep.subr.mxu0 0.0
        %497 = vmatpush1.msra.mxu0 0.0
        %498 = vmatprep.subr.mxu0 0.0
        %499 = vmatpush1.msra.mxu0 0.0
        %500 = vmatprep.subr.mxu0 0.0
        %501 = vmatpush1.msra.mxu0 0.0
        %502 = vmatprep.subr.mxu0 0.0
        %503 = vmatpush1.msra.mxu0 0.0
        %504 = vmatprep.subr.mxu0 0.0
        %505 = vmatpush1.msra.mxu0 0.0
        %506 = vmatprep.subr.mxu0 0.0
        %507 = vmatpush1.msra.mxu0 0.0
        %508 = vmatprep.subr.mxu0 0.0
        %509 = vmatpush1.msra.mxu0 0.0
        %510 = vmatprep.subr.mxu0 0.0
        %511 = vmatpush1.msra.mxu0 0.0
        %512 = vmatprep.subr.mxu0 0.0
        %513 = vmatpush1.msra.mxu0 0.0
        %514 = vmatprep.subr.mxu0 0.0
        %515 = vmatpush1.msra.mxu0 0.0
        %516 = vmatprep.subr.mxu0 0.0
        %517 = vmatpush1.msra.mxu0 0.0
        %518 = vmatprep.subr.mxu0 0.0
        %519 = vmatpush1.msra.mxu0 0.0
        %520 = vmatprep.subr.mxu0 0.0
        %521 = vmatpush1.msra.mxu0 0.0
        %522 = vmatprep.subr.mxu0 0.0
        %523 = vmatpush1.msra.mxu0 0.0
        %524 = vmatprep.subr.mxu0 0.0
        %525 = vmatpush1.msra.mxu0 0.0
        %526 = vmatprep.subr.mxu0 0.0
        %527 = vmatpush1.msra.mxu0 0.0
        %528 = vmatprep.subr.mxu0 0.0
        %529 = vmatpush1.msra.mxu0 0.0
        %530 = vmatprep.subr.mxu0 0.0
        %531 = vmatpush1.msra.mxu0 0.0
        %532 = vmatprep.subr.mxu0 0.0
        %533 = vmatpush1.msra.mxu0 0.0
        %534 = vmatprep.subr.mxu0 0.0
        %535 = vmatpush1.msra.mxu0 0.0
        %536 = vmatprep.subr.mxu0 0.0
        %537 = vmatpush1.msra.mxu0 0.0
        %538 = vmatprep.subr.mxu0 0.0
        %539 = vmatpush1.msra.mxu0 0.0
        %540 = vmatprep.subr.mxu0 0.0
        %541 = vmatpush1.msra.mxu0 0.0
        %542 = vmatprep.subr.mxu0 0.0
        %543 = vmatpush1.msra.mxu0 0.0
        %544 = vmatprep.subr.mxu0 0.0
        %545 = vmatpush1.msra.mxu0 0.0
        %546 = vmatprep.mubr.f32.mxu0 0.0
        %547 = vmatmul.mubr.f32.gmra.mrb[0].mxu0 %v480
        %v548 = vpop.f32.mrb[0].mxu0
        %v549 = vadd.f32 %v478, %v548
        %v550 = vpop.f32.mrb[0].mxu0
        %551 = vdwg.mxu0
        %v552 = vmax.f32 %v549, 0.0
        %v553 = vrot.slane %v296, 1
        %v554 = vrot.slane %v297, 1
        %vm555 = vcmask 31744
        %v557 = vsel %vm555, %v552, 0
        %vm559 = vcmask 1043456
        %v560 = vsel %vm559, %v553, 0
        %v562 = vsel %vm559, %v554, 0
        %564 = vmatprep.subr.mxu0 %v562
        %565 = vmatpush1.msra.mxu0 %v560
        %566 = vmatprep.subr.mxu0 0.0
        %567 = vmatpush1.msra.mxu0 0.0
        %568 = vmatprep.subr.mxu0 0.0
        %569 = vmatpush1.msra.mxu0 0.0
        %570 = vmatprep.subr.mxu0 0.0
        %571 = vmatpush1.msra.mxu0 0.0
        %572 = vmatprep.subr.mxu0 0.0
        %573 = vmatpush1.msra.mxu0 0.0
        %574 = vmatprep.subr.mxu0 0.0
        %575 = vmatpush1.msra.mxu0 0.0
        %576 = vmatprep.subr.mxu0 0.0
        %577 = vmatpush1.msra.mxu0 0.0
        %578 = vmatprep.subr.mxu0 0.0
        %579 = vmatpush1.msra.mxu0 0.0
        %580 = vmatprep.subr.mxu0 0.0
        %581 = vmatpush1.msra.mxu0 0.0
        %582 = vmatprep.subr.mxu0 0.0
        %583 = vmatpush1.msra.mxu0 0.0
        %584 = vmatprep.subr.mxu0 0.0
        %585 = vmatpush1.msra.mxu0 0.0
        %586 = vmatprep.subr.mxu0 0.0
        %587 = vmatpush1.msra.mxu0 0.0
        %588 = vmatprep.subr.mxu0 0.0
        %589 = vmatpush1.msra.mxu0 0.0
        %590 = vmatprep.subr.mxu0 0.0
        %591 = vmatpush1.msra.mxu0 0.0
        %592 = vmatprep.subr.mxu0 0.0
        %593 = vmatpush1.msra.mxu0 0.0
        %594 = vmatprep.subr.mxu0 0.0
        %595 = vmatpush1.msra.mxu0 0.0
        %596 = vmatprep.subr.mxu0 0.0
        %597 = vmatpush1.msra.mxu0 0.0
        %598 = vmatprep.subr.mxu0 0.0
        %599 = vmatpush1.msra.mxu0 0.0
        %600 = vmatprep.subr.mxu0 0.0
        %601 = vmatpush1.msra.mxu0 0.0
        %602 = vmatprep.subr.mxu0 0.0
        %603 = vmatpush1.msra.mxu0 0.0
        %604 = vmatprep.subr.mxu0 0.0
        %605 = vmatpush1.msra.mxu0 0.0
        %606 = vmatprep.subr.mxu0 0.0
        %607 = vmatpush1.msra.mxu0 0.0
        %608 = vmatprep.subr.mxu0 0.0
        %609 = vmatpush1.msra.mxu0 0.0
        %610 = vmatprep.subr.mxu0 0.0
        %611 = vmatpush1.msra.mxu0 0.0
        %612 = vmatprep.subr.mxu0 0.0
        %613 = vmatpush1.msra.mxu0 0.0
        %614 = vmatprep.subr.mxu0 0.0
        %615 = vmatpush1.msra.mxu0 0.0
        %616 = vmatprep.subr.mxu0 0.0
        %617 = vmatpush1.msra.mxu0 0.0
        %618 = vmatprep.subr.mxu0 0.0
        %619 = vmatpush1.msra.mxu0 0.0
        %620 = vmatprep.subr.mxu0 0.0
        %621 = vmatpush1.msra.mxu0 0.0
        %622 = vmatprep.subr.mxu0 0.0
        %623 = vmatpush1.msra.mxu0 0.0
        %624 = vmatprep.subr.mxu0 0.0
        %625 = vmatpush1.msra.mxu0 0.0
        %626 = vmatprep.subr.mxu0 0.0
        %627 = vmatpush1.msra.mxu0 0.0
        %628 = vmatprep.mubr.f32.mxu0 0.0
        %629 = vmatmul.mubr.f32.gmra.mrb[0].mxu0 %v557
        %v630 = vpop.f32.mrb[0].mxu0
        %v631 = vadd.f32 0.0, %v630
        %v632 = vpop.f32.mrb[0].mxu0
        %v633 = vadd.f32 0.0, %v632
        %634 = vdwg.mxu0
        %v635 = vrot.slane %v294, 4
        %636 = vrot.lane.b32.xlu0 %v293, 123
        %v637 = vpop.permute.xlu0 %636
        %v639 = vrot.slane %v472, 4
        %v641 = vsel %vm312, %v635, 0
        %643 = vmatprep.subr.mxu0 0.0
        %644 = vmatpush1.msra.mxu0 %v637
        %645 = vmatprep.subr.mxu0 0.0
        %646 = vmatpush1.msra.mxu0 0.0
        %647 = vmatprep.subr.mxu0 0.0
        %648 = vmatpush1.msra.mxu0 0.0
        %649 = vmatprep.subr.mxu0 0.0
        %650 = vmatpush1.msra.mxu0 0.0
        %651 = vmatprep.subr.mxu0 0.0
        %652 = vmatpush1.msra.mxu0 0.0
        %653 = vmatprep.subr.mxu0 0.0
        %654 = vmatpush1.msra.mxu0 0.0
        %655 = vmatprep.subr.mxu0 0.0
        %656 = vmatpush1.msra.mxu0 0.0
        %657 = vmatprep.subr.mxu0 0.0
        %658 = vmatpush1.msra.mxu0 0.0
        %659 = vmatprep.subr.mxu0 0.0
        %660 = vmatpush1.msra.mxu0 0.0
        %661 = vmatprep.subr.mxu0 0.0
        %662 = vmatpush1.msra.mxu0 0.0
        %663 = vmatprep.subr.mxu0 0.0
        %664 = vmatpush1.msra.mxu0 0.0
        %665 = vmatprep.subr.mxu0 0.0
        %666 = vmatpush1.msra.mxu0 0.0
        %667 = vmatprep.subr.mxu0 0.0
        %668 = vmatpush1.msra.mxu0 0.0
        %669 = vmatprep.subr.mxu0 0.0
        %670 = vmatpush1.msra.mxu0 0.0
        %671 = vmatprep.subr.mxu0 0.0
        %672 = vmatpush1.msra.mxu0 0.0
        %673 = vmatprep.subr.mxu0 0.0
        %674 = vmatpush1.msra.mxu0 0.0
        %675 = vmatprep.subr.mxu0 0.0
        %676 = vmatpush1.msra.mxu0 0.0
        %677 = vmatprep.subr.mxu0 0.0
        %678 = vmatpush1.msra.mxu0 0.0
        %679 = vmatprep.subr.mxu0 0.0
        %680 = vmatpush1.msra.mxu0 0.0
        %681 = vmatprep.subr.mxu0 0.0
        %682 = vmatpush1.msra.mxu0 0.0
        %683 = vmatprep.subr.mxu0 0.0
        %684 = vmatpush1.msra.mxu0 0.0
        %685 = vmatprep.subr.mxu0 0.0
        %686 = vmatpush1.msra.mxu0 0.0
        %687 = vmatprep.subr.mxu0 0.0
        %688 = vmatpush1.msra.mxu0 0.0
        %689 = vmatprep.subr.mxu0 0.0
        %690 = vmatpush1.msra.mxu0 0.0
        %691 = vmatprep.subr.mxu0 0.0
        %692 = vmatpush1.msra.mxu0 0.0
        %693 = vmatprep.subr.mxu0 0.0
        %694 = vmatpush1.msra.mxu0 0.0
        %695 = vmatprep.subr.mxu0 0.0
        %696 = vmatpush1.msra.mxu0 0.0
        %697 = vmatprep.subr.mxu0 0.0
        %698 = vmatpush1.msra.mxu0 0.0
        %699 = vmatprep.subr.mxu0 0.0
        %700 = vmatpush1.msra.mxu0 0.0
        %701 = vmatprep.subr.mxu0 0.0
        %702 = vmatpush1.msra.mxu0 0.0
        %703 = vmatprep.subr.mxu0 0.0
        %704 = vmatpush1.msra.mxu0 0.0
        %705 = vmatprep.subr.mxu0 0.0
        %706 = vmatpush1.msra.mxu0 0.0
        %707 = vmatprep.mubr.f32.mxu0 0.0
        %708 = vmatmul.mubr.f32.gmra.mrb[0].mxu0 %v641
        %v709 = vpop.f32.mrb[0].mxu0
        %v710 = vadd.f32 %v639, %v709
        %v711 = vpop.f32.mrb[0].mxu0
        %712 = vdwg.mxu0
        %v713 = vmax.f32 %v710, 0.0
        %vm716 = vcmask 1042432
        %v717 = vrot.slane %v296, 5
        %v718 = vrot.slane %v298, 5
        %v719 = vsel %vm716, %v717, %v718
        %v720 = vrot.slane %v297, 5
        %v721 = vrot.slane %v299, 5
        %v722 = vsel %vm716, %v720, %v721
        %vm725 = vcmask 72704
        %v727 = vsel %vm725, %v713, 0
        %v729 = vsel %vm391, %v718, 0
        %v731 = vsel %vm391, %v721, 0
        %733 = vmatprep.subr.mxu0 %v722
        %734 = vmatpush1.msra.mxu0 %v719
        %735 = vmatprep.subr.mxu0 %v731
        %736 = vmatpush1.msra.mxu0 %v729
        %737 = vmatprep.subr.mxu0 0.0
        %738 = vmatpush1.msra.mxu0 0.0
        %739 = vmatprep.subr.mxu0 0.0
        %740 = vmatpush1.msra.mxu0 0.0
        %741 = vmatprep.subr.mxu0 0.0
        %742 = vmatpush1.msra.mxu0 0.0
        %743 = vmatprep.subr.mxu0 0.0
        %744 = vmatpush1.msra.mxu0 0.0
        %745 = vmatprep.subr.mxu0 0.0
        %746 = vmatpush1.msra.mxu0 0.0
        %747 = vmatprep.subr.mxu0 0.0
        %748 = vmatpush1.msra.mxu0 0.0
        %749 = vmatprep.subr.mxu0 0.0
        %750 = vmatpush1.msra.mxu0 0.0
        %751 = vmatprep.subr.mxu0 0.0
        %752 = vmatpush1.msra.mxu0 0.0
        %753 = vmatprep.subr.mxu0 0.0
        %754 = vmatpush1.msra.mxu0 0.0
        %755 = vmatprep.subr.mxu0 0.0
        %756 = vmatpush1.msra.mxu0 0.0
        %757 = vmatprep.subr.mxu0 0.0
        %758 = vmatpush1.msra.mxu0 0.0
        %759 = vmatprep.subr.mxu0 0.0
        %760 = vmatpush1.msra.mxu0 0.0
        %761 = vmatprep.subr.mxu0 0.0
        %762 = vmatpush1.msra.mxu0 0.0
        %763 = vmatprep.subr.mxu0 0.0
        %764 = vmatpush1.msra.mxu0 0.0
        %765 = vmatprep.subr.mxu0 0.0
        %766 = vmatpush1.msra.mxu0 0.0
        %767 = vmatprep.subr.mxu0 0.0
        %768 = vmatpush1.msra.mxu0 0.0
        %769 = vmatprep.subr.mxu0 0.0
        %770 = vmatpush1.msra.mxu0 0.0
        %771 = vmatprep.subr.mxu0 0.0
        %772 = vmatpush1.msra.mxu0 0.0
        %773 = vmatprep.subr.mxu0 0.0
        %774 = vmatpush1.msra.mxu0 0.0
        %775 = vmatprep.subr.mxu0 0.0
        %776 = vmatpush1.msra.mxu0 0.0
        %777 = vmatprep.subr.mxu0 0.0
        %778 = vmatpush1.msra.mxu0 0.0
        %779 = vmatprep.subr.mxu0 0.0
        %780 = vmatpush1.msra.mxu0 0.0
        %781 = vmatprep.subr.mxu0 0.0
        %782 = vmatpush1.msra.mxu0 0.0
        %783 = vmatprep.subr.mxu0 0.0
        %784 = vmatpush1.msra.mxu0 0.0
        %785 = vmatprep.subr.mxu0 0.0
        %786 = vmatpush1.msra.mxu0 0.0
        %787 = vmatprep.subr.mxu0 0.0
        %788 = vmatpush1.msra.mxu0 0.0
        %789 = vmatprep.subr.mxu0 0.0
        %790 = vmatpush1.msra.mxu0 0.0
        %791 = vmatprep.subr.mxu0 0.0
        %792 = vmatpush1.msra.mxu0 0.0
        %793 = vmatprep.subr.mxu0 0.0
        %794 = vmatpush1.msra.mxu0 0.0
        %795 = vmatprep.subr.mxu0 0.0
        %796 = vmatpush1.msra.mxu0 0.0
        %797 = vmatprep.mubr.f32.mxu0 0.0
        %798 = vmatmul.mubr.f32.gmra.mrb[0].mxu0 %v727
        %v799 = vpop.f32.mrb[0].mxu0
        %v800 = vadd.f32 0.0, %v799
        %v801 = vpop.f32.mrb[0].mxu0
        %v802 = vadd.f32 0.0, %v801
        %803 = vdwg.mxu0
        %v804 = vrot.slane %v294, 6
        %805 = vrot.lane.b32.xlu0 %v293, 114
        %v806 = vpop.permute.xlu0 %805
        %v808 = vrot.slane %v472, 6
        %v810 = vsel %vm312, %v804, 0
        %812 = vmatprep.subr.mxu0 0.0
        %813 = vmatpush1.msra.mxu0 %v806
        %814 = vmatprep.subr.mxu0 0.0
        %815 = vmatpush1.msra.mxu0 0.0
        %816 = vmatprep.subr.mxu0 0.0
        %817 = vmatpush1.msra.mxu0 0.0
        %818 = vmatprep.subr.mxu0 0.0
        %819 = vmatpush1.msra.mxu0 0.0
        %820 = vmatprep.subr.mxu0 0.0
        %821 = vmatpush1.msra.mxu0 0.0
        %822 = vmatprep.subr.mxu0 0.0
        %823 = vmatpush1.msra.mxu0 0.0
        %824 = vmatprep.subr.mxu0 0.0
        %825 = vmatpush1.msra.mxu0 0.0
        %826 = vmatprep.subr.mxu0 0.0
        %827 = vmatpush1.msra.mxu0 0.0
        %828 = vmatprep.subr.mxu0 0.0
        %829 = vmatpush1.msra.mxu0 0.0
        %830 = vmatprep.subr.mxu0 0.0
        %831 = vmatpush1.msra.mxu0 0.0
        %832 = vmatprep.subr.mxu0 0.0
        %833 = vmatpush1.msra.mxu0 0.0
        %834 = vmatprep.subr.mxu0 0.0
        %835 = vmatpush1.msra.mxu0 0.0
        %836 = vmatprep.subr.mxu0 0.0
        %837 = vmatpush1.msra.mxu0 0.0
        %838 = vmatprep.subr.mxu0 0.0
        %839 = vmatpush1.msra.mxu0 0.0
        %840 = vmatprep.subr.mxu0 0.0
        %841 = vmatpush1.msra.mxu0 0.0
        %842 = vmatprep.subr.mxu0 0.0
        %843 = vmatpush1.msra.mxu0 0.0
        %844 = vmatprep.subr.mxu0 0.0
        %845 = vmatpush1.msra.mxu0 0.0
        %846 = vmatprep.subr.mxu0 0.0
        %847 = vmatpush1.msra.mxu0 0.0
        %848 = vmatprep.subr.mxu0 0.0
        %849 = vmatpush1.msra.mxu0 0.0
        %850 = vmatprep.subr.mxu0 0.0
        %851 = vmatpush1.msra.mxu0 0.0
        %852 = vmatprep.subr.mxu0 0.0
        %853 = vmatpush1.msra.mxu0 0.0
        %854 = vmatprep.subr.mxu0 0.0
        %855 = vmatpush1.msra.mxu0 0.0
        %856 = vmatprep.subr.mxu0 0.0
        %857 = vmatpush1.msra.mxu0 0.0
        %858 = vmatprep.subr.mxu0 0.0
        %859 = vmatpush1.msra.mxu0 0.0
        %860 = vmatprep.subr.mxu0 0.0
        %861 = vmatpush1.msra.mxu0 0.0
        %862 = vmatprep.subr.mxu0 0.0
        %863 = vmatpush1.msra.mxu0 0.0
        %864 = vmatprep.subr.mxu0 0.0
        %865 = vmatpush1.msra.mxu0 0.0
        %866 = vmatprep.subr.mxu0 0.0
        %867 = vmatpush1.msra.mxu0 0.0
        %868 = vmatprep.subr.mxu0 0.0
        %869 = vmatpush1.msra.mxu0 0.0
        %870 = vmatprep.subr.mxu0 0.0
        %871 = vmatpush1.msra.mxu0 0.0
        %872 = vmatprep.subr.mxu0 0.0
        %873 = vmatpush1.msra.mxu0 0.0
        %874 = vmatprep.subr.mxu0 0.0
        %875 = vmatpush1.msra.mxu0 0.0
        %876 = vmatprep.mubr.f32.mxu0 0.0
        %877 = vmatmul.mubr.f32.gmra.mrb[0].mxu0 %v810
        %v878 = vpop.f32.mrb[0].mxu0
        %v879 = vadd.f32 %v808, %v878
        %v880 = vpop.f32.mrb[0].mxu0
        %881 = vdwg.mxu0
        %v882 = vmax.f32 %v879, 0.0
        %vm893 = vcmask 1041408
        %v894 = vrot.slane %v298, 6
        %v895 = vrot.slane %v300, 6
        %v896 = vsel %vm893, %v894, %v895
        %v897 = vrot.slane %v299, 6
        %v898 = vrot.slane %v301, 6
        %v899 = vsel %vm893, %v897, %v898
        %v900 = vrot.slane %v302, 6
        %v901 = vsel %vm893, %v895, %v900
        %v902 = vrot.slane %v303, 6
        %v903 = vsel %vm893, %v898, %v902
        %v904 = vrot.slane %v304, 6
        %v905 = vsel %vm893, %v900, %v904
        %v906 = vrot.slane %v305, 6
        %v907 = vsel %vm893, %v902, %v906
        %v908 = vrot.slane %v306, 6
        %v909 = vsel %vm893, %v904, %v908
        %v910 = vrot.slane %v307, 6
        %v911 = vsel %vm893, %v906, %v910
        %v912 = vrot.slane %v308, 6
        %v913 = vsel %vm893, %v908, %v912
        %v914 = vrot.slane %v309, 6
        %v915 = vsel %vm893, %v910, %v914
        %vm924 = vcmask 293888
        %v926 = vsel %vm924, %v882, 0
        %v928 = vsel %vm559, %v913, 0
        %v930 = vsel %vm559, %v915, 0
        %932 = vmatprep.subr.mxu0 %v899
        %933 = vmatpush1.msra.mxu0 %v896
        %934 = vmatprep.subr.mxu0 %v903
        %935 = vmatpush1.msra.mxu0 %v901
        %936 = vmatprep.subr.mxu0 %v907
        %937 = vmatpush1.msra.mxu0 %v905
        %938 = vmatprep.subr.mxu0 %v911
        %939 = vmatpush1.msra.mxu0 %v909
        %940 = vmatprep.subr.mxu0 %v930
        %941 = vmatpush1.msra.mxu0 %v928
        %942 = vmatprep.subr.mxu0 0.0
        %943 = vmatpush1.msra.mxu0 0.0
        %944 = vmatprep.subr.mxu0 0.0
        %945 = vmatpush1.msra.mxu0 0.0
        %946 = vmatprep.subr.mxu0 0.0
        %947 = vmatpush1.msra.mxu0 0.0
        %948 = vmatprep.subr.mxu0 0.0
        %949 = vmatpush1.msra.mxu0 0.0
        %950 = vmatprep.subr.mxu0 0.0
        %951 = vmatpush1.msra.mxu0 0.0
        %952 = vmatprep.subr.mxu0 0.0
        %953 = vmatpush1.msra.mxu0 0.0
        %954 = vmatprep.subr.mxu0 0.0
        %955 = vmatpush1.msra.mxu0 0.0
        %956 = vmatprep.subr.mxu0 0.0
        %957 = vmatpush1.msra.mxu0 0.0
        %958 = vmatprep.subr.mxu0 0.0
        %959 = vmatpush1.msra.mxu0 0.0
        %960 = vmatprep.subr.mxu0 0.0
        %961 = vmatpush1.msra.mxu0 0.0
        %962 = vmatprep.subr.mxu0 0.0
        %963 = vmatpush1.msra.mxu0 0.0
        %964 = vmatprep.subr.mxu0 0.0
        %965 = vmatpush1.msra.mxu0 0.0
        %966 = vmatprep.subr.mxu0 0.0
        %967 = vmatpush1.msra.mxu0 0.0
        %968 = vmatprep.subr.mxu0 0.0
        %969 = vmatpush1.msra.mxu0 0.0
        %970 = vmatprep.subr.mxu0 0.0
        %971 = vmatpush1.msra.mxu0 0.0
        %972 = vmatprep.subr.mxu0 0.0
        %973 = vmatpush1.msra.mxu0 0.0
        %974 = vmatprep.subr.mxu0 0.0
        %975 = vmatpush1.msra.mxu0 0.0
        %976 = vmatprep.subr.mxu0 0.0
        %977 = vmatpush1.msra.mxu0 0.0
        %978 = vmatprep.subr.mxu0 0.0
        %979 = vmatpush1.msra.mxu0 0.0
        %980 = vmatprep.subr.mxu0 0.0
        %981 = vmatpush1.msra.mxu0 0.0
        %982 = vmatprep.subr.mxu0 0.0
        %983 = vmatpush1.msra.mxu0 0.0
        %984 = vmatprep.subr.mxu0 0.0
        %985 = vmatpush1.msra.mxu0 0.0
        %986 = vmatprep.subr.mxu0 0.0
        %987 = vmatpush1.msra.mxu0 0.0
        %988 = vmatprep.subr.mxu0 0.0
        %989 = vmatpush1.msra.mxu0 0.0
        %990 = vmatprep.subr.mxu0 0.0
        %991 = vmatpush1.msra.mxu0 0.0
        %992 = vmatprep.subr.mxu0 0.0
        %993 = vmatpush1.msra.mxu0 0.0
        %994 = vmatprep.subr.mxu0 0.0
        %995 = vmatpush1.msra.mxu0 0.0
        %996 = vmatprep.mubr.f32.mxu0 0.0
        %997 = vmatmul.mubr.f32.gmra.mrb[0].mxu0 %v926
        %v998 = vpop.f32.mrb[0].mxu0
        %v999 = vadd.f32 0.0, %v998
        %v1000 = vpop.f32.mrb[0].mxu0
        %v1001 = vadd.f32 0.0, %v1000
        %1002 = vdwg.mxu0
        %v1005 = vrot.slane %v631, 6
        %v1006 = vrot.slane %v633, 6
        %v1011 = vrot.slane %v800, 4
        %v1012 = vrot.slane %v802, 4
        %v1017 = vrot.slane %v999, 2
        %v1018 = vrot.slane %v1001, 2
        %v1021 = vsel %vm893, %v465, %v1005
        %v1022 = vsel %vm893, %v467, %v1006
        %v1023 = vsel %vm559, %v1021, %v1011
        %v1024 = vsel %vm559, %v1022, %v1012
        %vm1025 = vcmask 1045504
        %v1026 = vsel %vm1025, %v1023, %v1017
        %v1027 = vsel %vm1025, %v1024, %v1018
        %1028 = vst [vmem:[%s271] sm:$0xff] %v310
        %1029 = vst [vmem:[%s271 + $0x8] sm:$0xff] %v311
        %1030 = vst [vmem:[%s271 + $0x10] sm:$0xff] %v1026
        %1031 = vst [vmem:[%s271 + $0x18] sm:$0xff] %v1027
        %s1032 = sand.u32 %s163, 1
        %s1033 = scalar_lea.sflag [#allocation3], %s1032
        %s1034 = sand.u32 %s163, 1
        %s1035 = smul.addr %s1034, 32
        %s1036 = scalar_lea.vmem [#allocation2], %s1035
        // Predicated region
        $region41: #{_ppm_impl.3} parent=39 // pred_check
          %p1037 = pneg %p173
        $region42: #{_ppm_impl.3} parent=39 // pred_check_branch
          %1039 = sbr.rel (%p1037) target = $region44
        $region43: #{_ppm_impl.3} parent=39 // pred_region
          %s1040 = smul.u32 2, %s24
          %s1042 = ssub.s32 512, 512
          %1043 = vsyncadd %s1033, %s1042
          %s1044 = smul.addr %s23, 4
          %s1045 = sadd.s32 %s1040, %s1044
          %s1046 = smul.addr %s1045, 128
          %s1047 = scalar_lea.hbm %s5, %s1046
          %s1048 = sshll.u32 %s1036, 4
          %s1049 = int_to_ptr.vmem [resolvable:$true] %s1048
          %1054 = dma.vmem_to_hbm [thread:$0]  %s1049, 512, %s1047, %s1033, 256, 256, 16
        $region44: #{_ppm_impl.3} parent=39 // pred_fallthru
          _
      $region40: #{_ppm_impl.3} parent=5 // pred_fallthru
        _
      %p1055 = scmp.le.s32.totalorder 2, %s14
      // Predicated region
      $region45: #{_ppm_impl.3} parent=5 // pred_check
        %p1056 = pneg %p1055
      $region46: #{_ppm_impl.3} parent=5 // pred_check_branch
        %1058 = sbr.rel (%p1056) target = $region48
      $region47: #{_ppm_impl.3} parent=5 // pred_region
        %s1059 = ssub.s32 %s14, 2
        // Predicated region
        $region49: #{_ppm_impl.3} parent=47 // pred_check
          %p1060 = pneg %p179
        $region50: #{_ppm_impl.3} parent=47 // pred_check_branch
          %1062 = sbr.rel (%p1060) target = $region52
        $region51: #{_ppm_impl.3} parent=47 // pred_region
          %s1063 = sand.u32 %s164, 1
          %s1064 = scalar_lea.sflag [#allocation3], %s1063
          %s1065 = sand.u32 %s164, 1
          %s1066 = smul.addr %s1065, 32
          %s1067 = scalar_lea.vmem [#allocation2], %s1066
          %1068 = dma.done %s1064, 512
        $region52: #{_ppm_impl.3} parent=47 // pred_fallthru
          _
      $region48: #{_ppm_impl.3} parent=5 // pred_fallthru
        _
    $region6: #{_ppm_impl.3} parent=1 // loop_footer
      %s18 = sadd.s32 1, %s14
    $region7: #{_ppm_impl.3} parent=1 // loop_footer_branch
      %13 = sbr.rel target = $region3
    $region8: #{_ppm_impl.3} parent=1 // loop_exit
      _
    %1069 = vsyncpa [#allocation3], 1
    %s1070 = scalar_lea.sflag [#allocation3], 1
    %1071 = vsyncpa %s1070, 1

</llo_original>
